<compile_context>
chip_gen: v7x
topology: tpu7x:2x2x1
jax: 0.10.0
libtpu: 0.0.40
codegen_flags: <defaults>
</compile_context>

<pallas_src>
import functools

import numpy as np
import jax
import jax.numpy as jnp
from jax.experimental import pallas as pl
from jax.experimental.pallas import tpu as pltpu

EPS = 1e-5


# ----------------------------- Pallas kernel --------------------------------
def residual_block_kernel(x_ref, b1_ref, b2_ref, vecs_ref, pool_ref, out_ref,
                          *, img_h, inv_count):
    f32 = jnp.float32
    mm = b1_ref.dtype                      # MXU operand dtype (bf16 by default)
    wco = out_ref.shape[-1]                # W * Cout (lane-dense channel axis)

    # Packed per-channel (lane-dense) vectors.
    g1, be1 = vecs_ref[0:1, :], vecs_ref[1:2, :]
    g2, be2 = vecs_ref[2:3, :], vecs_ref[3:4, :]
    bsk = vecs_ref[4:5, :]

    def shifted(v):
        # [v[y-1] | v[y] | v[y+1]] on the lane axis, rows at image borders
        # zeroed.  pltpu.roll is a sublane rotation on the XLU, the boundary
        # masks run on the VPU, so the MXU only ever sees one big conv matmul.
        y = jax.lax.broadcasted_iota(jnp.int32, v.shape, 0) % img_h
        v_dn = jnp.where(y != 0, pltpu.roll(v, 1, 0), 0.0)
        v_up = jnp.where(y != img_h - 1, pltpu.roll(v, v.shape[0] - 1, 0), 0.0)
        return jnp.concatenate([v_dn, v, v_up], axis=1).astype(mm)

    def batchnorm(acc, gamma, beta):
        # Training-mode BN over (N, H, W) per channel, two-pass, f32.  Row-sum
        # first so the lane-pool matmul is M=1 (near-free on the MXU); `pool`
        # sums over the W positions folded into the lane dim of each channel
        # and re-broadcasts, keeping everything lane-dense (no relayout).
        s = jnp.sum(acc, axis=0, keepdims=True)
        mean = jnp.dot(s, pool_ref[...], preferred_element_type=f32) * inv_count
        c = acc - mean
        s2 = jnp.sum(c * c, axis=0, keepdims=True)
        var = jnp.dot(s2, pool_ref[...], preferred_element_type=f32) * inv_count
        return c * jax.lax.rsqrt(var + EPS) * gamma + beta

    x = x_ref[...]                                           # (NH, W*Cin) f32

    # conv1 + fused 1x1 skip: one K = 3*W*Cin dot whose output columns are
    # [conv1 | skip].  (conv biases are absorbed by the BN mean subtraction.)
    t = jnp.dot(shifted(x), b1_ref[...], preferred_element_type=f32)
    skip = t[:, wco:] + bsk
    acc1 = t[:, :wco]

    h1 = jnp.maximum(batchnorm(acc1, g1, be1), 0.0)

    # conv2: one K = 3*W*Cout dot on h1, consumed straight from registers.
    acc2 = jnp.dot(shifted(h1), b2_ref[...], preferred_element_type=f32)
    h2 = batchnorm(acc2, g2, be2)

    # Residual add + ReLU; W*Cout % 128 == 0 -> full-lane, unmasked store.
    out_ref[...] = jnp.maximum(h2 + skip, 0.0).astype(out_ref.dtype)


# ------------------------------- wrapper -------------------------------------
def _band_mats(w, width):
    """w: (3, 3, Cin, Cout) HWIO -> per-dy banded matrices (width*Cin, width*Cout).

    Each band maps a lane-dense row slab (row, width*Cin) to its contribution to
    the conv output (row, width*Cout); the 'same' zero-padding along W is folded
    in (taps falling outside the image simply have no band entry).
    """
    return [sum(jnp.kron(jnp.eye(width, k=1 - dx, dtype=w.dtype), w[dy, dx])
                for dx in range(3))
            for dy in range(3)]


def residual_block(x_nchw, params, matmul_dtype=jnp.bfloat16):
    """x_nchw: (N, Cin, H, W) f32 -> (N, Cout, H, W) f32.

    matmul_dtype: MXU operand dtype (bf16 default, incl. v5e); BN / accumulation
    stay f32.
    """
    # TODO(synk): accept/emit NHWC at the module boundary for production sizes;
    # these transposes are a full HBM round-trip outside the fused kernel.
    x = jnp.transpose(x_nchw, (0, 2, 3, 1))                  # NHWC
    N, H, W, Cin = x.shape
    Cout = params["w1"].shape[-1]
    WCo = W * Cout
    mm = matmul_dtype

    # Pad Cin with zero channels so the lane-dense row width W*Cin is a multiple
    # of 128 (native lane tiles for the in-kernel concat and matmul operands).
    # Zero channels contribute nothing to either conv, so the result is unchanged.
    cin_p = Cin
    while (W * cin_p) % 128 != 0:
        cin_p += 1
    w1, wsk = params["w1"], params["wsk"]
    if cin_p != Cin:
        x = jnp.pad(x, ((0, 0), (0, 0), (0, 0), (0, cin_p - Cin)))
        w1 = jnp.pad(w1, ((0, 0), (0, 0), (0, cin_p - Cin), (0, 0)))
        wsk = jnp.pad(wsk, ((0, cin_p - Cin), (0, 0)))

    # Lane-dense activations: rows = (n, y), lanes = (x, c).  Kept in f32 (the
    # in-kernel sublane rolls stay f32; matmul operands are cast in-kernel).
    x_flat = x.reshape(N * H, W * cin_p)

    # K-stacked band weights: row blocks [dy=0 | dy=1 | dy=2] matched to the
    # kernel's [x_dn | x | x_up] lane concat; conv1 additionally carries the
    # 1x1 skip as extra output columns (only the centre/dy=1 block feeds it).
    B1 = _band_mats(w1, W)                                   # 3 x (W*Cin, W*Cout)
    B2 = _band_mats(params["w2"], W)                         # 3 x (W*Cout, W*Cout)
    Bsk = jnp.kron(jnp.eye(W, dtype=jnp.float32), wsk)       # (W*Cin, W*Cout)
    zsk = jnp.zeros_like(Bsk)
    b1_full = jnp.concatenate(
        [jnp.concatenate(B1, axis=0),
         jnp.concatenate([zsk, Bsk, zsk], axis=0)], axis=1)  # (3*W*Cin, 2*W*Cout)
    b2_full = jnp.concatenate(B2, axis=0)                    # (3*W*Cout, W*Cout)

    # All per-channel vectors packed into a single (8, W*Cout) tile.
    # (conv biases b1/b2 are intentionally absent: absorbed by training-mode BN.)
    tile = lambda v: jnp.tile(v, W).reshape(1, WCo)
    vecs = jnp.concatenate(
        [tile(params["g1"]), tile(params["be1"]),
         tile(params["g2"]), tile(params["be2"]),
         tile(params["bsk"]), jnp.zeros((3, WCo), jnp.float32)], axis=0)

    # Channel-pool matrix: sums over the W positions of each channel and
    # re-broadcasts (lane-dense BN statistics, no relayout).
    pool = jnp.kron(jnp.ones((W, W), jnp.float32), jnp.eye(Cout, dtype=jnp.float32))

    kernel = functools.partial(residual_block_kernel,
                               img_h=H, inv_count=1.0 / float(N * H * W))
    vmem = pl.BlockSpec(memory_space=pltpu.MemorySpace.VMEM)
    # TODO(synk): for large N*H, switch to a row-tiled 'parallel' grid (row block
    # a multiple of 8/16) with cross-tile BN partial sums so v7x's second
    # TensorCore is used and tiles stay under its 64 MiB VMEM; and switch from
    # band matrices to im2col / per-tap dots once W*Cin exceeds the native MXU K.
    out_flat = pl.pallas_call(
        kernel,
        out_shape=jax.ShapeDtypeStruct((N * H, WCo), jnp.float32),
        in_specs=[vmem] * 5,
        out_specs=vmem,
    )(x_flat, b1_full.astype(mm), b2_full.astype(mm), vecs, pool)

    return jnp.transpose(out_flat.reshape(N, H, W, Cout), (0, 3, 1, 2))  # NCHW


# ---------------- pure-JAX reference (for correctness check) ----------------
def reference(x_nchw, params):
    x = jnp.transpose(x_nchw, (0, 2, 3, 1))
    Cin = x.shape[-1]
    Cout = params["w1"].shape[-1]

    def conv(v, w, b, pad):
        y = jax.lax.conv_general_dilated(
            v, w, window_strides=(1, 1), padding=pad,
            dimension_numbers=("NHWC", "HWIO", "NHWC"))
        return y + b.reshape(1, 1, 1, -1)

    def bn(y, g, be):
        mean = jnp.mean(y, axis=(0, 1, 2), keepdims=True)
        var = jnp.mean((y - mean) ** 2, axis=(0, 1, 2), keepdims=True)
        return ((y - mean) * jax.lax.rsqrt(var + EPS)
                * g.reshape(1, 1, 1, -1) + be.reshape(1, 1, 1, -1))

    residual = conv(x, params["wsk"].reshape(1, 1, Cin, Cout),
                    params["bsk"], [(0, 0), (0, 0)])
    out = conv(x, params["w1"], params["b1"], [(1, 1), (1, 1)])
    out = jnp.maximum(bn(out, params["g1"], params["be1"]), 0.0)
    out = conv(out, params["w2"], params["b2"], [(1, 1), (1, 1)])
    out = bn(out, params["g2"], params["be2"])
    out = jnp.maximum(out + residual, 0.0)
    return jnp.transpose(out, (0, 3, 1, 2))


def init_params(key, cin, cout):
    ks = jax.random.split(key, 6)
    return {
        # conv weights stored HWIO (synthetic init, no checkpoint to match)
        "w1": 0.1 * jax.random.normal(ks[0], (3, 3, cin, cout), jnp.float32),
        "b1": 0.1 * jax.random.normal(ks[1], (cout,), jnp.float32),
        "w2": 0.1 * jax.random.normal(ks[2], (3, 3, cout, cout), jnp.float32),
        "b2": 0.1 * jax.random.normal(ks[3], (cout,), jnp.float32),
        "wsk": 0.1 * jax.random.normal(ks[4], (cin, cout), jnp.float32),
        "bsk": 0.1 * jax.random.normal(ks[5], (cout,), jnp.float32),
        # BatchNorm affine params at default init (weight=1, bias=0)
        "g1": jnp.ones((cout,), jnp.float32), "be1": jnp.zeros((cout,), jnp.float32),
        "g2": jnp.ones((cout,), jnp.float32), "be2": jnp.zeros((cout,), jnp.float32),
    }


if __name__ == "__main__":
    key = jax.random.PRNGKey(0)
    k_x, k_p = jax.random.split(key)

    N, Cin, Cout, H, W = 2, 4, 8, 16, 16
    x = jax.random.normal(k_x, (N, Cin, H, W), jnp.float32)      # NCHW input
    params = init_params(k_p, Cin, Cout)

    ref = jax.block_until_ready(reference(x, params))

    # f32 MXU operands: tight check against the f32 reference.
    out_f32 = jax.block_until_ready(
        residual_block(x, params, matmul_dtype=jnp.float32))
    np.testing.assert_allclose(np.asarray(out_f32), np.asarray(ref),
                               rtol=5e-3, atol=5e-3)

    # Default bf16 MXU operands (fast path on v5e/v6e/v7x); BN stays f32, so
    # only bf16-level drift vs the f32 reference is expected.
    out_bf16 = jax.block_until_ready(residual_block(x, params))
    np.testing.assert_allclose(np.asarray(out_bf16), np.asarray(ref),
                               rtol=5e-2, atol=1.5e-1)

    print("KERNEL_OK")
</pallas_src>

<mosaic_0001>
module attributes {stable_mosaic.version = 11 : i64} {
  func.func @residual_block_kernel(%arg0: memref<32x128xf32, #tpu.memory_space<vmem>>, %arg1: memref<384x256xf32, #tpu.memory_space<vmem>>, %arg2: memref<384x128xf32, #tpu.memory_space<vmem>>, %arg3: memref<8x128xf32, #tpu.memory_space<vmem>>, %arg4: memref<128x128xf32, #tpu.memory_space<vmem>>, %arg5: memref<32x128xf32, #tpu.memory_space<vmem>>) attributes {dimension_semantics = [], scalar_prefetch = 0 : i64, scratch_operands = 0 : i64, tpu.core_type = #tpu.core_type<tc>} {
    %c0 = arith.constant 0 : index
    %c0_0 = arith.constant 0 : index
    %0 = vector.load %arg3[%c0, %c0_0] : memref<8x128xf32, #tpu.memory_space<vmem>>, vector<1x128xf32>
    %c1 = arith.constant 1 : index
    %c0_1 = arith.constant 0 : index
    %1 = vector.load %arg3[%c1, %c0_1] : memref<8x128xf32, #tpu.memory_space<vmem>>, vector<1x128xf32>
    %c2 = arith.constant 2 : index
    %c0_2 = arith.constant 0 : index
    %2 = vector.load %arg3[%c2, %c0_2] : memref<8x128xf32, #tpu.memory_space<vmem>>, vector<1x128xf32>
    %c3 = arith.constant 3 : index
    %c0_3 = arith.constant 0 : index
    %3 = vector.load %arg3[%c3, %c0_3] : memref<8x128xf32, #tpu.memory_space<vmem>>, vector<1x128xf32>
    %c4 = arith.constant 4 : index
    %c0_4 = arith.constant 0 : index
    %4 = vector.load %arg3[%c4, %c0_4] : memref<8x128xf32, #tpu.memory_space<vmem>>, vector<1x128xf32>
    %c0_5 = arith.constant 0 : index
    %c0_6 = arith.constant 0 : index
    %5 = vector.load %arg0[%c0_5, %c0_6] : memref<32x128xf32, #tpu.memory_space<vmem>>, vector<32x128xf32>
    %6 = tpu.iota {dimensions = array<i32: 0>} : vector<32x128xi32>
    %c16_i32 = arith.constant 16 : i32
    %c0_i32 = arith.constant 0 : i32
    %7 = arith.cmpi eq, %c16_i32, %c0_i32 : i32
    %c1_i32 = arith.constant 1 : i32
    %8 = arith.select %7, %c1_i32, %c16_i32 : i32
    %9 = vector.broadcast %8 : i32 to vector<32x128xi32>
    %10 = arith.remsi %6, %9 : vector<32x128xi32>
    %c0_i32_7 = arith.constant 0 : i32
    %11 = vector.broadcast %c0_i32_7 : i32 to vector<32x128xi32>
    %12 = arith.cmpi ne, %10, %11 : vector<32x128xi32>
    %c0_i32_8 = arith.constant 0 : i32
    %13 = vector.broadcast %c0_i32_8 : i32 to vector<32x128xi32>
    %14 = arith.cmpi slt, %10, %13 : vector<32x128xi32>
    %c0_i32_9 = arith.constant 0 : i32
    %15 = arith.cmpi slt, %8, %c0_i32_9 : i32
    %16 = vector.broadcast %15 : i1 to vector<32x128xi1>
    %17 = vector.broadcast %16 : vector<32x128xi1> to vector<32x128xi1>
    %18 = arith.xori %14, %17 : vector<32x128xi1>
    %19 = arith.andi %18, %12 : vector<32x128xi1>
    %20 = vector.broadcast %8 : i32 to vector<32x128xi32>
    %21 = arith.addi %10, %20 : vector<32x128xi32>
    %22 = arith.select %19, %21, %10 : vector<32x128xi1>, vector<32x128xi32>
    %c0_i32_10 = arith.constant 0 : i32
    %23 = vector.broadcast %c0_i32_10 : i32 to vector<32x128xi32>
    %24 = arith.cmpi ne, %22, %23 : vector<32x128xi32>
    %c1_i32_11 = arith.constant 1 : i32
    %25 = tpu.dynamic_rotate %5 by %c1_i32_11 dim 0 : vector<32x128xf32>, i32 -> vector<32x128xf32>
    %cst = arith.constant 0.000000e+00 : f32
    %26 = vector.broadcast %cst : f32 to vector<32x128xf32>
    %27 = arith.select %24, %25, %26 : vector<32x128xi1>, vector<32x128xf32>
    %c15_i32 = arith.constant 15 : i32
    %28 = vector.broadcast %c15_i32 : i32 to vector<32x128xi32>
    %29 = arith.cmpi ne, %22, %28 : vector<32x128xi32>
    %c31_i32 = arith.constant 31 : i32
    %30 = tpu.dynamic_rotate %5 by %c31_i32 dim 0 : vector<32x128xf32>, i32 -> vector<32x128xf32>
    %cst_12 = arith.constant 0.000000e+00 : f32
    %31 = vector.broadcast %cst_12 : f32 to vector<32x128xf32>
    %32 = arith.select %29, %30, %31 : vector<32x128xi1>, vector<32x128xf32>
    %33 = tpu.concatenate %27, %5, %32 in 1 : vector<32x128xf32>, vector<32x128xf32>, vector<32x128xf32> -> vector<32x384xf32>
    %c0_13 = arith.constant 0 : index
    %c0_14 = arith.constant 0 : index
    %34 = vector.load %arg1[%c0_13, %c0_14] : memref<384x256xf32, #tpu.memory_space<vmem>>, vector<384x256xf32>
    %cst_15 = arith.constant dense<0.000000e+00> : vector<32x256xf32>
    %35 = tpu.matmul %33, %34, %cst_15 {dimension_numbers = #tpu.dot_dimension_numbers<[1], [0], [0], [1], [0, 0, 1, 1], [], []>} : vector<32x384xf32>, vector<384x256xf32>, vector<32x256xf32> -> vector<32x256xf32>
    %36 = vector.extract_strided_slice %35 {offsets = [0, 128], sizes = [32, 128], strides = [1, 1]} : vector<32x256xf32> to vector<32x128xf32>
    %37 = vector.broadcast %4 : vector<1x128xf32> to vector<32x128xf32>
    %38 = arith.addf %36, %37 : vector<32x128xf32>
    %39 = vector.extract_strided_slice %35 {offsets = [0, 0], sizes = [32, 128], strides = [1, 1]} : vector<32x256xf32> to vector<32x128xf32>
    %cst_16 = arith.constant dense<0.000000e+00> : vector<128xf32>
    %40 = vector.multi_reduction <add>, %39, %cst_16 [0] : vector<32x128xf32> to vector<128xf32>
    %41 = vector.shape_cast %40 : vector<128xf32> to vector<1x128xf32>
    %c0_17 = arith.constant 0 : index
    %c0_18 = arith.constant 0 : index
    %42 = vector.load %arg4[%c0_17, %c0_18] : memref<128x128xf32, #tpu.memory_space<vmem>>, vector<128x128xf32>
    %cst_19 = arith.constant dense<0.000000e+00> : vector<1x128xf32>
    %43 = tpu.matmul %41, %42, %cst_19 {dimension_numbers = #tpu.dot_dimension_numbers<[1], [0], [0], [1], [0, 0, 1, 1], [], []>} : vector<1x128xf32>, vector<128x128xf32>, vector<1x128xf32> -> vector<1x128xf32>
    %cst_20 = arith.constant 0.001953125 : f32
    %44 = vector.broadcast %cst_20 : f32 to vector<1x128xf32>
    %45 = arith.mulf %43, %44 : vector<1x128xf32>
    %46 = vector.broadcast %45 : vector<1x128xf32> to vector<32x128xf32>
    %47 = arith.subf %39, %46 : vector<32x128xf32>
    %48 = arith.mulf %47, %47 : vector<32x128xf32>
    %cst_21 = arith.constant dense<0.000000e+00> : vector<128xf32>
    %49 = vector.multi_reduction <add>, %48, %cst_21 [0] : vector<32x128xf32> to vector<128xf32>
    %50 = vector.shape_cast %49 : vector<128xf32> to vector<1x128xf32>
    %c0_22 = arith.constant 0 : index
    %c0_23 = arith.constant 0 : index
    %51 = vector.load %arg4[%c0_22, %c0_23] : memref<128x128xf32, #tpu.memory_space<vmem>>, vector<128x128xf32>
    %cst_24 = arith.constant dense<0.000000e+00> : vector<1x128xf32>
    %52 = tpu.matmul %50, %51, %cst_24 {dimension_numbers = #tpu.dot_dimension_numbers<[1], [0], [0], [1], [0, 0, 1, 1], [], []>} : vector<1x128xf32>, vector<128x128xf32>, vector<1x128xf32> -> vector<1x128xf32>
    %cst_25 = arith.constant 0.001953125 : f32
    %53 = vector.broadcast %cst_25 : f32 to vector<1x128xf32>
    %54 = arith.mulf %52, %53 : vector<1x128xf32>
    %cst_26 = arith.constant 9.99999974E-6 : f32
    %55 = vector.broadcast %cst_26 : f32 to vector<1x128xf32>
    %56 = arith.addf %54, %55 : vector<1x128xf32>
    %57 = math.rsqrt %56 : vector<1x128xf32>
    %58 = vector.broadcast %57 : vector<1x128xf32> to vector<32x128xf32>
    %59 = arith.mulf %47, %58 : vector<32x128xf32>
    %60 = vector.broadcast %0 : vector<1x128xf32> to vector<32x128xf32>
    %61 = arith.mulf %59, %60 : vector<32x128xf32>
    %62 = vector.broadcast %1 : vector<1x128xf32> to vector<32x128xf32>
    %63 = arith.addf %61, %62 : vector<32x128xf32>
    %cst_27 = arith.constant 0.000000e+00 : f32
    %64 = vector.broadcast %cst_27 : f32 to vector<32x128xf32>
    %65 = arith.maximumf %63, %64 : vector<32x128xf32>
    %66 = tpu.iota {dimensions = array<i32: 0>} : vector<32x128xi32>
    %c16_i32_28 = arith.constant 16 : i32
    %c0_i32_29 = arith.constant 0 : i32
    %67 = arith.cmpi eq, %c16_i32_28, %c0_i32_29 : i32
    %c1_i32_30 = arith.constant 1 : i32
    %68 = arith.select %67, %c1_i32_30, %c16_i32_28 : i32
    %69 = vector.broadcast %68 : i32 to vector<32x128xi32>
    %70 = arith.remsi %66, %69 : vector<32x128xi32>
    %c0_i32_31 = arith.constant 0 : i32
    %71 = vector.broadcast %c0_i32_31 : i32 to vector<32x128xi32>
    %72 = arith.cmpi ne, %70, %71 : vector<32x128xi32>
    %c0_i32_32 = arith.constant 0 : i32
    %73 = vector.broadcast %c0_i32_32 : i32 to vector<32x128xi32>
    %74 = arith.cmpi slt, %70, %73 : vector<32x128xi32>
    %c0_i32_33 = arith.constant 0 : i32
    %75 = arith.cmpi slt, %68, %c0_i32_33 : i32
    %76 = vector.broadcast %75 : i1 to vector<32x128xi1>
    %77 = vector.broadcast %76 : vector<32x128xi1> to vector<32x128xi1>
    %78 = arith.xori %74, %77 : vector<32x128xi1>
    %79 = arith.andi %78, %72 : vector<32x128xi1>
    %80 = vector.broadcast %68 : i32 to vector<32x128xi32>
    %81 = arith.addi %70, %80 : vector<32x128xi32>
    %82 = arith.select %79, %81, %70 : vector<32x128xi1>, vector<32x128xi32>
    %c0_i32_34 = arith.constant 0 : i32
    %83 = vector.broadcast %c0_i32_34 : i32 to vector<32x128xi32>
    %84 = arith.cmpi ne, %82, %83 : vector<32x128xi32>
    %c1_i32_35 = arith.constant 1 : i32
    %85 = tpu.dynamic_rotate %65 by %c1_i32_35 dim 0 : vector<32x128xf32>, i32 -> vector<32x128xf32>
    %cst_36 = arith.constant 0.000000e+00 : f32
    %86 = vector.broadcast %cst_36 : f32 to vector<32x128xf32>
    %87 = arith.select %84, %85, %86 : vector<32x128xi1>, vector<32x128xf32>
    %c15_i32_37 = arith.constant 15 : i32
    %88 = vector.broadcast %c15_i32_37 : i32 to vector<32x128xi32>
    %89 = arith.cmpi ne, %82, %88 : vector<32x128xi32>
    %c31_i32_38 = arith.constant 31 : i32
    %90 = tpu.dynamic_rotate %65 by %c31_i32_38 dim 0 : vector<32x128xf32>, i32 -> vector<32x128xf32>
    %cst_39 = arith.constant 0.000000e+00 : f32
    %91 = vector.broadcast %cst_39 : f32 to vector<32x128xf32>
    %92 = arith.select %89, %90, %91 : vector<32x128xi1>, vector<32x128xf32>
    %93 = tpu.concatenate %87, %65, %92 in 1 : vector<32x128xf32>, vector<32x128xf32>, vector<32x128xf32> -> vector<32x384xf32>
    %c0_40 = arith.constant 0 : index
    %c0_41 = arith.constant 0 : index
    %94 = vector.load %arg2[%c0_40, %c0_41] : memref<384x128xf32, #tpu.memory_space<vmem>>, vector<384x128xf32>
    %cst_42 = arith.constant dense<0.000000e+00> : vector<32x128xf32>
    %95 = tpu.matmul %93, %94, %cst_42 {dimension_numbers = #tpu.dot_dimension_numbers<[1], [0], [0], [1], [0, 0, 1, 1], [], []>} : vector<32x384xf32>, vector<384x128xf32>, vector<32x128xf32> -> vector<32x128xf32>
    %cst_43 = arith.constant dense<0.000000e+00> : vector<128xf32>
    %96 = vector.multi_reduction <add>, %95, %cst_43 [0] : vector<32x128xf32> to vector<128xf32>
    %97 = vector.shape_cast %96 : vector<128xf32> to vector<1x128xf32>
    %c0_44 = arith.constant 0 : index
    %c0_45 = arith.constant 0 : index
    %98 = vector.load %arg4[%c0_44, %c0_45] : memref<128x128xf32, #tpu.memory_space<vmem>>, vector<128x128xf32>
    %cst_46 = arith.constant dense<0.000000e+00> : vector<1x128xf32>
    %99 = tpu.matmul %97, %98, %cst_46 {dimension_numbers = #tpu.dot_dimension_numbers<[1], [0], [0], [1], [0, 0, 1, 1], [], []>} : vector<1x128xf32>, vector<128x128xf32>, vector<1x128xf32> -> vector<1x128xf32>
    %cst_47 = arith.constant 0.001953125 : f32
    %100 = vector.broadcast %cst_47 : f32 to vector<1x128xf32>
    %101 = arith.mulf %99, %100 : vector<1x128xf32>
    %102 = vector.broadcast %101 : vector<1x128xf32> to vector<32x128xf32>
    %103 = arith.subf %95, %102 : vector<32x128xf32>
    %104 = arith.mulf %103, %103 : vector<32x128xf32>
    %cst_48 = arith.constant dense<0.000000e+00> : vector<128xf32>
    %105 = vector.multi_reduction <add>, %104, %cst_48 [0] : vector<32x128xf32> to vector<128xf32>
    %106 = vector.shape_cast %105 : vector<128xf32> to vector<1x128xf32>
    %c0_49 = arith.constant 0 : index
    %c0_50 = arith.constant 0 : index
    %107 = vector.load %arg4[%c0_49, %c0_50] : memref<128x128xf32, #tpu.memory_space<vmem>>, vector<128x128xf32>
    %cst_51 = arith.constant dense<0.000000e+00> : vector<1x128xf32>
    %108 = tpu.matmul %106, %107, %cst_51 {dimension_numbers = #tpu.dot_dimension_numbers<[1], [0], [0], [1], [0, 0, 1, 1], [], []>} : vector<1x128xf32>, vector<128x128xf32>, vector<1x128xf32> -> vector<1x128xf32>
    %cst_52 = arith.constant 0.001953125 : f32
    %109 = vector.broadcast %cst_52 : f32 to vector<1x128xf32>
    %110 = arith.mulf %108, %109 : vector<1x128xf32>
    %cst_53 = arith.constant 9.99999974E-6 : f32
    %111 = vector.broadcast %cst_53 : f32 to vector<1x128xf32>
    %112 = arith.addf %110, %111 : vector<1x128xf32>
    %113 = math.rsqrt %112 : vector<1x128xf32>
    %114 = vector.broadcast %113 : vector<1x128xf32> to vector<32x128xf32>
    %115 = arith.mulf %103, %114 : vector<32x128xf32>
    %116 = vector.broadcast %2 : vector<1x128xf32> to vector<32x128xf32>
    %117 = arith.mulf %115, %116 : vector<32x128xf32>
    %118 = vector.broadcast %3 : vector<1x128xf32> to vector<32x128xf32>
    %119 = arith.addf %117, %118 : vector<32x128xf32>
    %120 = arith.addf %119, %38 : vector<32x128xf32>
    %cst_54 = arith.constant 0.000000e+00 : f32
    %121 = vector.broadcast %cst_54 : f32 to vector<32x128xf32>
    %122 = arith.maximumf %120, %121 : vector<32x128xf32>
    %c0_55 = arith.constant 0 : index
    %c0_56 = arith.constant 0 : index
    %123 = vector.load %arg5[%c0_55, %c0_56] : memref<32x128xf32, #tpu.memory_space<vmem>>, vector<32x128xf32>
    tpu.vector_store %arg5[%c0_55, %c0_56], %122 {strides = array<i32>} : memref<32x128xf32, #tpu.memory_space<vmem>>, vector<32x128xf32>,
    return
  }
}

</mosaic_0001>

<llo_original>
// kernel: tpu_custom_call.1
$region0: #{tpu_custom_call.1}
  #allocation0 [shape = 'u32[]', space=smem, size = 0x4, offset = 0x4, fixed_abs, tag = 'smem constant byte address 0x4 - core index']
  #allocation1 [shape = 'u32[144,128]{1,0:T(1,128)}', space=vmem, size = 0x12000, scoped, tag = 'internal scratch']
  %s0 = inlined_call_operand.hbm [shape: f32[32,128], index: 0, kind: input, shape index: {}]
  %s1 = inlined_call_operand.hbm [shape: f32[384,256], index: 1, kind: input, shape index: {}]
  %s2 = inlined_call_operand.hbm [shape: f32[384,128], index: 2, kind: input, shape index: {}]
  %s3 = inlined_call_operand.vmem [shape: f32[8,128], index: 3, kind: input, shape index: {}]
  %s4 = inlined_call_operand.hbm [shape: f32[128,128], index: 4, kind: input, shape index: {}]
  %s5 = inlined_call_operand.hbm [shape: f32[32,128], index: 5, kind: output, shape index: {}]
  %s6 = sld [smem:[#allocation0]]
  $region46: #{tpu_custom_call.1} parent=0
    _
  %s8 = ssub.s32 1, %s6
  %s9 = scalar_select 0, %s8, %s6
  $region1: #{tpu_custom_call.1} parent=0
    #allocation2 [shape = 'u8[16384]{0}', space=vmem, size = 0x4000, scoped, tag = 'input window, operand 0, single buffered']
    #allocation3 [shape = 's32[1]{0}', space=sflag, size = 0x4, scoped, tag = 'scoped memory for tpu_custom_call.1']
    #allocation4 [shape = 's32[1]{0}', space=sflag, size = 0x4, scoped, tag = 'scoped memory for tpu_custom_call.1']
    #allocation5 [shape = 'u8[393216]{0}', space=vmem, size = 0x60000, scoped, tag = 'input window, operand 1, single buffered']
    #allocation6 [shape = 's32[1]{0}', space=sflag, size = 0x4, scoped, tag = 'scoped memory for tpu_custom_call.1']
    #allocation7 [shape = 'u8[196608]{0}', space=vmem, size = 0x30000, scoped, tag = 'input window, operand 2, single buffered']
    #allocation8 [shape = 'u8[65536]{0}', space=vmem, size = 0x10000, scoped, tag = 'input window, operand 4, single buffered']
    #allocation9 [shape = 's32[1]{0}', space=sflag, size = 0x4, scoped, tag = 'scoped memory for tpu_custom_call.1']
    #allocation10 [shape = 'u8[16384]{0}', space=vmem, size = 0x4000, scoped, tag = 'output window, operand 0, single buffered']
    %10 = vsyncpa [#allocation3], 0
    %11 = vsyncpa [#allocation6], 0
    %12 = vsyncpa [#allocation9], 0
    %13 = vsyncpa [#allocation4], 0
    // Predicated region
    $region2: #{tpu_custom_call.1} parent=1 // pred_check
      _
    $region3: #{tpu_custom_call.1} parent=1 // pred_check_branch
      %15 = sbr.rel (0) target = $region5
    $region4: #{tpu_custom_call.1} parent=1 // pred_region
      %s17 = ssub.s32 512, 512
      %18 = vsyncadd [#allocation3], %s17
      %s19 = sshll.u32 [#allocation2], 4
      %s20 = int_to_ptr.vmem [resolvable:$true] %s19
      %25 = dma.hbm_to_vmem [thread:$0]  %s0, 512, %s20, [#allocation3], 128, 128, 8
    $region5: #{tpu_custom_call.1} parent=1 // pred_fallthru
      _
    // Predicated region
    $region6: #{tpu_custom_call.1} parent=1 // pred_check
      _
    $region7: #{tpu_custom_call.1} parent=1 // pred_check_branch
      %27 = sbr.rel (0) target = $region9
    $region8: #{tpu_custom_call.1} parent=1 // pred_region
      %s29 = ssub.s32 12288, 12288
      %30 = vsyncadd [#allocation6], %s29
      %s31 = sshll.u32 [#allocation5], 4
      %s32 = int_to_ptr.vmem [resolvable:$true] %s31
      %37 = dma.hbm_to_vmem [thread:$0]  %s1, 12288, %s32, [#allocation6], 256, 256, 16
    $region9: #{tpu_custom_call.1} parent=1 // pred_fallthru
      _
    // Predicated region
    $region10: #{tpu_custom_call.1} parent=1 // pred_check
      _
    $region11: #{tpu_custom_call.1} parent=1 // pred_check_branch
      %39 = sbr.rel (0) target = $region13
    $region12: #{tpu_custom_call.1} parent=1 // pred_region
      %s41 = ssub.s32 6144, 6144
      %42 = vsyncadd [#allocation6], %s41
      %s43 = sshll.u32 [#allocation7], 4
      %s44 = int_to_ptr.vmem [resolvable:$true] %s43
      %49 = dma.hbm_to_vmem [thread:$0]  %s2, 6144, %s44, [#allocation6], 128, 128, 8
    $region13: #{tpu_custom_call.1} parent=1 // pred_fallthru
      _
    // Predicated region
    $region14: #{tpu_custom_call.1} parent=1 // pred_check
      _
    $region15: #{tpu_custom_call.1} parent=1 // pred_check_branch
      %51 = sbr.rel (0) target = $region17
    $region16: #{tpu_custom_call.1} parent=1 // pred_region
      _
    $region17: #{tpu_custom_call.1} parent=1 // pred_fallthru
      _
    // Predicated region
    $region18: #{tpu_custom_call.1} parent=1 // pred_check
      _
    $region19: #{tpu_custom_call.1} parent=1 // pred_check_branch
      %53 = sbr.rel (0) target = $region21
    $region20: #{tpu_custom_call.1} parent=1 // pred_region
      %s55 = ssub.s32 2048, 2048
      %56 = vsyncadd [#allocation9], %s55
      %s57 = sshll.u32 [#allocation8], 4
      %s58 = int_to_ptr.vmem [resolvable:$true] %s57
      %63 = dma.hbm_to_vmem [thread:$0]  %s4, 2048, %s58, [#allocation9], 128, 128, 8
    $region21: #{tpu_custom_call.1} parent=1 // pred_fallthru
      _
    // Predicated region
    $region22: #{tpu_custom_call.1} parent=1 // pred_check
      _
    $region23: #{tpu_custom_call.1} parent=1 // pred_check_branch
      %65 = sbr.rel (0) target = $region25
    $region24: #{tpu_custom_call.1} parent=1 // pred_region
      %66 = dma.done [#allocation3], 512
    $region25: #{tpu_custom_call.1} parent=1 // pred_fallthru
      _
    // Predicated region
    $region26: #{tpu_custom_call.1} parent=1 // pred_check
      _
    $region27: #{tpu_custom_call.1} parent=1 // pred_check_branch
      %68 = sbr.rel (0) target = $region29
    $region28: #{tpu_custom_call.1} parent=1 // pred_region
      %69 = dma.done [#allocation6], 12288
    $region29: #{tpu_custom_call.1} parent=1 // pred_fallthru
      _
    // Predicated region
    $region30: #{tpu_custom_call.1} parent=1 // pred_check
      _
    $region31: #{tpu_custom_call.1} parent=1 // pred_check_branch
      %71 = sbr.rel (0) target = $region33
    $region32: #{tpu_custom_call.1} parent=1 // pred_region
      %72 = dma.done [#allocation6], 6144
    $region33: #{tpu_custom_call.1} parent=1 // pred_fallthru
      _
    // Predicated region
    $region34: #{tpu_custom_call.1} parent=1 // pred_check
      _
    $region35: #{tpu_custom_call.1} parent=1 // pred_check_branch
      %74 = sbr.rel (0) target = $region37
    $region36: #{tpu_custom_call.1} parent=1 // pred_region
      %75 = dma.done [#allocation9], 2048
    $region37: #{tpu_custom_call.1} parent=1 // pred_fallthru
      _
    %v76 = vld [vmem:[%s3] sm:$0x1]
    %v77 = vld [vmem:[%s3 + $0x1] sm:$0x1]
    %v78 = vld [vmem:[%s3 + $0x2] sm:$0x1]
    %v79 = vld [vmem:[%s3 + $0x3] sm:$0x1]
    %v80 = vld [vmem:[%s3 + $0x4] sm:$0x1]
    %v81 = vld [vmem:[#allocation2] sm:$0xff]
    %v82 = vld [vmem:[#allocation2 + $0x8] sm:$0xff]
    %v83 = vld [vmem:[#allocation2 + $0x10] sm:$0xff]
    %v84 = vld [vmem:[#allocation2 + $0x18] sm:$0xff]
    %v85 = vlaneseq
    %v86 = vshrl.u32 %v85, 7
    %v87 = vadd.s32 %v86, 8
    %v88 = vadd.s32 %v86, 16
    %v89 = vadd.s32 %v86, 24
    %vm90 = vcmp.lt.s32.totalorder %v86, 0
    %v91 = vsub.s32 0, %v86
    %v92 = vsel %vm90, %v91, %v86
    %v93 = vshrl.u32 %v92, 4
    %v94 = vand.u32 %v92, 15
    %v95 = vsub.s32 0, %v94
    %v96 = vsel %vm90, %v95, %v94
    %vm97 = vcmp.lt.s32.totalorder %v87, 0
    %v98 = vsub.s32 0, %v87
    %v99 = vsel %vm97, %v98, %v87
    %v100 = vshrl.u32 %v99, 4
    %v101 = vand.u32 %v99, 15
    %v102 = vsub.s32 0, %v101
    %v103 = vsel %vm97, %v102, %v101
    %vm104 = vcmp.lt.s32.totalorder %v88, 0
    %v105 = vsub.s32 0, %v88
    %v106 = vsel %vm104, %v105, %v88
    %v107 = vshrl.u32 %v106, 4
    %v108 = vand.u32 %v106, 15
    %v109 = vsub.s32 0, %v108
    %v110 = vsel %vm104, %v109, %v108
    %vm111 = vcmp.lt.s32.totalorder %v89, 0
    %v112 = vsub.s32 0, %v89
    %v113 = vsel %vm111, %v112, %v89
    %v114 = vshrl.u32 %v113, 4
    %v115 = vand.u32 %v113, 15
    %v116 = vsub.s32 0, %v115
    %v117 = vsel %vm111, %v116, %v115
    %vm118 = vcmp.ne.s32.totalorder %v96, 0
    %vm119 = vcmp.ne.s32.totalorder %v103, 0
    %vm120 = vcmp.ne.s32.totalorder %v110, 0
    %vm121 = vcmp.ne.s32.totalorder %v117, 0
    %vm122 = vcmp.lt.s32.totalorder %v96, 0
    %vm123 = vcmp.lt.s32.totalorder %v103, 0
    %vm124 = vcmp.lt.s32.totalorder %v110, 0
    %vm125 = vcmp.lt.s32.totalorder %v117, 0
    %vm126 = vmand %vm122, %vm118
    %vm127 = vmand %vm123, %vm119
    %vm128 = vmand %vm124, %vm120
    %vm129 = vmand %vm125, %vm121
    %v130 = vadd.s32 %v96, 16
    %v131 = vadd.s32 %v103, 16
    %v132 = vadd.s32 %v110, 16
    %v133 = vadd.s32 %v117, 16
    %v134 = vsel %vm126, %v130, %v96
    %v135 = vsel %vm127, %v131, %v103
    %v136 = vsel %vm128, %v132, %v110
    %v137 = vsel %vm129, %v133, %v117
    %vm138 = vcmp.ne.s32.totalorder %v134, 0
    %vm139 = vcmp.ne.s32.totalorder %v135, 0
    %vm140 = vcmp.ne.s32.totalorder %v136, 0
    %vm141 = vcmp.ne.s32.totalorder %v137, 0
    %v142 = vrot.slane %v81, 7
    %v143 = vrot.slane %v82, 7
    %v144 = vrot.slane %v83, 7
    %v145 = vrot.slane %v84, 7
    %vm146 = vcmp.lt.s32.totalorder %v86, 1
    %v147 = vsel %vm146, %v144, %v145
    %v148 = vsel %vm146, %v143, %v144
    %v149 = vsel %vm146, %v142, %v143
    %v150 = vsel %vm146, %v145, %v142
    %v151 = vsel %vm138, %v150, 0.0
    %v152 = vsel %vm139, %v149, 0.0
    %v153 = vsel %vm140, %v148, 0.0
    %v154 = vsel %vm141, %v147, 0.0
    %vm155 = vcmp.ne.s32.totalorder %v134, 15
    %vm156 = vcmp.ne.s32.totalorder %v135, 15
    %vm157 = vcmp.ne.s32.totalorder %v136, 15
    %vm158 = vcmp.ne.s32.totalorder %v137, 15
    %v159 = vrot.slane %v81, 1
    %v160 = vrot.slane %v82, 1
    %v161 = vrot.slane %v83, 1
    %v162 = vrot.slane %v84, 1
    %vm163 = vcmp.lt.s32.totalorder %v86, 7
    %v164 = vsel %vm163, %v161, %v162
    %v165 = vsel %vm163, %v160, %v161
    %v166 = vsel %vm163, %v159, %v160
    %v167 = vsel %vm163, %v162, %v159
    %v168 = vsel %vm155, %v166, 0.0
    %v169 = vsel %vm156, %v165, 0.0
    %v170 = vsel %vm157, %v164, 0.0
    %v171 = vsel %vm158, %v167, 0.0
    %v172 = vld [vmem:[#allocation5] sm:$0xff]
    %v173 = vld [vmem:[#allocation5 + $0x8] sm:$0xff]
    %v174 = vld [vmem:[#allocation5 + $0x10] sm:$0xff]
    %v175 = vld [vmem:[#allocation5 + $0x18] sm:$0xff]
    %v176 = vld [vmem:[#allocation5 + $0x20] sm:$0xff]
    %v177 = vld [vmem:[#allocation5 + $0x28] sm:$0xff]
    %v178 = vld [vmem:[#allocation5 + $0x30] sm:$0xff]
    %v179 = vld [vmem:[#allocation5 + $0x38] sm:$0xff]
    %v180 = vld [vmem:[#allocation5 + $0x40] sm:$0xff]
    %v181 = vld [vmem:[#allocation5 + $0x48] sm:$0xff]
    %v182 = vld [vmem:[#allocation5 + $0x50] sm:$0xff]
    %v183 = vld [vmem:[#allocation5 + $0x58] sm:$0xff]
    %v184 = vld [vmem:[#allocation5 + $0x60] sm:$0xff]
    %v185 = vld [vmem:[#allocation5 + $0x68] sm:$0xff]
    %v186 = vld [vmem:[#allocation5 + $0x70] sm:$0xff]
    %v187 = vld [vmem:[#allocation5 + $0x78] sm:$0xff]
    %v188 = vld [vmem:[#allocation5 + $0x80] sm:$0xff]
    %v189 = vld [vmem:[#allocation5 + $0x88] sm:$0xff]
    %v190 = vld [vmem:[#allocation5 + $0x90] sm:$0xff]
    %v191 = vld [vmem:[#allocation5 + $0x98] sm:$0xff]
    %v192 = vld [vmem:[#allocation5 + $0xa0] sm:$0xff]
    %v193 = vld [vmem:[#allocation5 + $0xa8] sm:$0xff]
    %v194 = vld [vmem:[#allocation5 + $0xb0] sm:$0xff]
    %v195 = vld [vmem:[#allocation5 + $0xb8] sm:$0xff]
    %v196 = vld [vmem:[#allocation5 + $0xc0] sm:$0xff]
    %v197 = vld [vmem:[#allocation5 + $0xc8] sm:$0xff]
    %v198 = vld [vmem:[#allocation5 + $0xd0] sm:$0xff]
    %v199 = vld [vmem:[#allocation5 + $0xd8] sm:$0xff]
    %v200 = vld [vmem:[#allocation5 + $0xe0] sm:$0xff]
    %v201 = vld [vmem:[#allocation5 + $0xe8] sm:$0xff]
    %v202 = vld [vmem:[#allocation5 + $0xf0] sm:$0xff]
    %v203 = vld [vmem:[#allocation5 + $0xf8] sm:$0xff]
    %v204 = vld [vmem:[#allocation5 + $0x100] sm:$0xff]
    %v205 = vld [vmem:[#allocation5 + $0x108] sm:$0xff]
    %v206 = vld [vmem:[#allocation5 + $0x110] sm:$0xff]
    %v207 = vld [vmem:[#allocation5 + $0x118] sm:$0xff]
    %v208 = vld [vmem:[#allocation5 + $0x120] sm:$0xff]
    %v209 = vld [vmem:[#allocation5 + $0x128] sm:$0xff]
    %v210 = vld [vmem:[#allocation5 + $0x130] sm:$0xff]
    %v211 = vld [vmem:[#allocation5 + $0x138] sm:$0xff]
    %v212 = vld [vmem:[#allocation5 + $0x140] sm:$0xff]
    %v213 = vld [vmem:[#allocation5 + $0x148] sm:$0xff]
    %v214 = vld [vmem:[#allocation5 + $0x150] sm:$0xff]
    %v215 = vld [vmem:[#allocation5 + $0x158] sm:$0xff]
    %v216 = vld [vmem:[#allocation5 + $0x160] sm:$0xff]
    %v217 = vld [vmem:[#allocation5 + $0x168] sm:$0xff]
    %v218 = vld [vmem:[#allocation5 + $0x170] sm:$0xff]
    %v219 = vld [vmem:[#allocation5 + $0x178] sm:$0xff]
    %v220 = vld [vmem:[#allocation5 + $0x180] sm:$0xff]
    %v221 = vld [vmem:[#allocation5 + $0x188] sm:$0xff]
    %v222 = vld [vmem:[#allocation5 + $0x190] sm:$0xff]
    %v223 = vld [vmem:[#allocation5 + $0x198] sm:$0xff]
    %v224 = vld [vmem:[#allocation5 + $0x1a0] sm:$0xff]
    %v225 = vld [vmem:[#allocation5 + $0x1a8] sm:$0xff]
    %v226 = vld [vmem:[#allocation5 + $0x1b0] sm:$0xff]
    %v227 = vld [vmem:[#allocation5 + $0x1b8] sm:$0xff]
    %v228 = vld [vmem:[#allocation5 + $0x1c0] sm:$0xff]
    %v229 = vld [vmem:[#allocation5 + $0x1c8] sm:$0xff]
    %v230 = vld [vmem:[#allocation5 + $0x1d0] sm:$0xff]
    %v231 = vld [vmem:[#allocation5 + $0x1d8] sm:$0xff]
    %v232 = vld [vmem:[#allocation5 + $0x1e0] sm:$0xff]
    %v233 = vld [vmem:[#allocation5 + $0x1e8] sm:$0xff]
    %v234 = vld [vmem:[#allocation5 + $0x1f0] sm:$0xff]
    %v235 = vld [vmem:[#allocation5 + $0x1f8] sm:$0xff]
    %v236 = vld [vmem:[#allocation5 + $0x200] sm:$0xff]
    %v237 = vld [vmem:[#allocation5 + $0x208] sm:$0xff]
    %v238 = vld [vmem:[#allocation5 + $0x210] sm:$0xff]
    %v239 = vld [vmem:[#allocation5 + $0x218] sm:$0xff]
    %v240 = vld [vmem:[#allocation5 + $0x220] sm:$0xff]
    %v241 = vld [vmem:[#allocation5 + $0x228] sm:$0xff]
    %v242 = vld [vmem:[#allocation5 + $0x230] sm:$0xff]
    %v243 = vld [vmem:[#allocation5 + $0x238] sm:$0xff]
    %v244 = vld [vmem:[#allocation5 + $0x240] sm:$0xff]
    %v245 = vld [vmem:[#allocation5 + $0x248] sm:$0xff]
    %v246 = vld [vmem:[#allocation5 + $0x250] sm:$0xff]
    %v247 = vld [vmem:[#allocation5 + $0x258] sm:$0xff]
    %v248 = vld [vmem:[#allocation5 + $0x260] sm:$0xff]
    %v249 = vld [vmem:[#allocation5 + $0x268] sm:$0xff]
    %v250 = vld [vmem:[#allocation5 + $0x270] sm:$0xff]
    %v251 = vld [vmem:[#allocation5 + $0x278] sm:$0xff]
    %v252 = vld [vmem:[#allocation5 + $0x280] sm:$0xff]
    %v253 = vld [vmem:[#allocation5 + $0x288] sm:$0xff]
    %v254 = vld [vmem:[#allocation5 + $0x290] sm:$0xff]
    %v255 = vld [vmem:[#allocation5 + $0x298] sm:$0xff]
    %v256 = vld [vmem:[#allocation5 + $0x2a0] sm:$0xff]
    %v257 = vld [vmem:[#allocation5 + $0x2a8] sm:$0xff]
    %v258 = vld [vmem:[#allocation5 + $0x2b0] sm:$0xff]
    %v259 = vld [vmem:[#allocation5 + $0x2b8] sm:$0xff]
    %v260 = vld [vmem:[#allocation5 + $0x2c0] sm:$0xff]
    %v261 = vld [vmem:[#allocation5 + $0x2c8] sm:$0xff]
    %v262 = vld [vmem:[#allocation5 + $0x2d0] sm:$0xff]
    %v263 = vld [vmem:[#allocation5 + $0x2d8] sm:$0xff]
    %v264 = vld [vmem:[#allocation5 + $0x2e0] sm:$0xff]
    %v265 = vld [vmem:[#allocation5 + $0x2e8] sm:$0xff]
    %v266 = vld [vmem:[#allocation5 + $0x2f0] sm:$0xff]
    %v267 = vld [vmem:[#allocation5 + $0x2f8] sm:$0xff]
    %268 = vmatprep.subr.mxu0 %v173
    %269 = vmatpush1.msra.mxu0 %v172
    %270 = vmatprep.subr.mxu0 %v175
    %271 = vmatpush1.msra.mxu0 %v174
    %272 = vmatprep.subr.mxu0 %v177
    %273 = vmatpush1.msra.mxu0 %v176
    %274 = vmatprep.subr.mxu0 %v179
    %275 = vmatpush1.msra.mxu0 %v178
    %276 = vmatprep.subr.mxu0 %v181
    %277 = vmatpush1.msra.mxu0 %v180
    %278 = vmatprep.subr.mxu0 %v183
    %279 = vmatpush1.msra.mxu0 %v182
    %280 = vmatprep.subr.mxu0 %v185
    %281 = vmatpush1.msra.mxu0 %v184
    %282 = vmatprep.subr.mxu0 %v187
    %283 = vmatpush1.msra.mxu0 %v186
    %284 = vmatprep.subr.mxu0 %v189
    %285 = vmatpush1.msra.mxu0 %v188
    %286 = vmatprep.subr.mxu0 %v191
    %287 = vmatpush1.msra.mxu0 %v190
    %288 = vmatprep.subr.mxu0 %v193
    %289 = vmatpush1.msra.mxu0 %v192
    %290 = vmatprep.subr.mxu0 %v195
    %291 = vmatpush1.msra.mxu0 %v194
    %292 = vmatprep.subr.mxu0 %v197
    %293 = vmatpush1.msra.mxu0 %v196
    %294 = vmatprep.subr.mxu0 %v199
    %295 = vmatpush1.msra.mxu0 %v198
    %296 = vmatprep.subr.mxu0 %v201
    %297 = vmatpush1.msra.mxu0 %v200
    %298 = vmatprep.subr.mxu0 %v203
    %299 = vmatpush1.msra.mxu0 %v202
    %300 = vmatprep.subr.mxu0 %v205
    %301 = vmatpush1.msra.mxu0 %v204
    %302 = vmatprep.subr.mxu0 %v207
    %303 = vmatpush1.msra.mxu0 %v206
    %304 = vmatprep.subr.mxu0 %v209
    %305 = vmatpush1.msra.mxu0 %v208
    %306 = vmatprep.subr.mxu0 %v211
    %307 = vmatpush1.msra.mxu0 %v210
    %308 = vmatprep.subr.mxu0 %v213
    %309 = vmatpush1.msra.mxu0 %v212
    %310 = vmatprep.subr.mxu0 %v215
    %311 = vmatpush1.msra.mxu0 %v214
    %312 = vmatprep.subr.mxu0 %v217
    %313 = vmatpush1.msra.mxu0 %v216
    %314 = vmatprep.subr.mxu0 %v219
    %315 = vmatpush1.msra.mxu0 %v218
    %316 = vmatprep.subr.mxu0 %v221
    %317 = vmatpush1.msra.mxu0 %v220
    %318 = vmatprep.subr.mxu0 %v223
    %319 = vmatpush1.msra.mxu0 %v222
    %320 = vmatprep.subr.mxu0 %v225
    %321 = vmatpush1.msra.mxu0 %v224
    %322 = vmatprep.subr.mxu0 %v227
    %323 = vmatpush1.msra.mxu0 %v226
    %324 = vmatprep.subr.mxu0 %v229
    %325 = vmatpush1.msra.mxu0 %v228
    %326 = vmatprep.subr.mxu0 %v231
    %327 = vmatpush1.msra.mxu0 %v230
    %328 = vmatprep.subr.mxu0 %v233
    %329 = vmatpush1.msra.mxu0 %v232
    %330 = vmatprep.subr.mxu0 %v235
    %331 = vmatpush1.msra.mxu0 %v234
    %332 = vmatprep.mubr.f32.mxu0 %v81
    %333 = vmatmul.mubr.f32.gmra.mrb[0].mxu0 %v151
    %v334 = vpop.f32.mrb[0].mxu0
    %v335 = vadd.f32 0.0, %v334
    %v336 = vpop.f32.mrb[0].mxu0
    %v337 = vadd.f32 0.0, %v336
    %338 = vmatprep.mubr.f32.mxu0 %v82
    %339 = vmatmul.mubr.f32.gmra.mrb[0].mxu0 %v152
    %v340 = vpop.f32.mrb[0].mxu0
    %v341 = vadd.f32 0.0, %v340
    %v342 = vpop.f32.mrb[0].mxu0
    %v343 = vadd.f32 0.0, %v342
    %344 = vmatprep.mubr.f32.mxu0 %v83
    %345 = vmatmul.mubr.f32.gmra.mrb[0].mxu0 %v153
    %v346 = vpop.f32.mrb[0].mxu0
    %v347 = vadd.f32 0.0, %v346
    %v348 = vpop.f32.mrb[0].mxu0
    %v349 = vadd.f32 0.0, %v348
    %350 = vmatprep.mubr.f32.mxu0 %v84
    %351 = vmatmul.mubr.f32.gmra.mrb[0].mxu0 %v154
    %v352 = vpop.f32.mrb[0].mxu0
    %v353 = vadd.f32 0.0, %v352
    %v354 = vpop.f32.mrb[0].mxu0
    %v355 = vadd.f32 0.0, %v354
    %356 = vdwg.mxu0
    %357 = vmatprep.subr.mxu0 %v237
    %358 = vmatpush1.msra.mxu0 %v236
    %359 = vmatprep.subr.mxu0 %v239
    %360 = vmatpush1.msra.mxu0 %v238
    %361 = vmatprep.subr.mxu0 %v241
    %362 = vmatpush1.msra.mxu0 %v240
    %363 = vmatprep.subr.mxu0 %v243
    %364 = vmatpush1.msra.mxu0 %v242
    %365 = vmatprep.subr.mxu0 %v245
    %366 = vmatpush1.msra.mxu0 %v244
    %367 = vmatprep.subr.mxu0 %v247
    %368 = vmatpush1.msra.mxu0 %v246
    %369 = vmatprep.subr.mxu0 %v249
    %370 = vmatpush1.msra.mxu0 %v248
    %371 = vmatprep.subr.mxu0 %v251
    %372 = vmatpush1.msra.mxu0 %v250
    %373 = vmatprep.subr.mxu0 %v253
    %374 = vmatpush1.msra.mxu0 %v252
    %375 = vmatprep.subr.mxu0 %v255
    %376 = vmatpush1.msra.mxu0 %v254
    %377 = vmatprep.subr.mxu0 %v257
    %378 = vmatpush1.msra.mxu0 %v256
    %379 = vmatprep.subr.mxu0 %v259
    %380 = vmatpush1.msra.mxu0 %v258
    %381 = vmatprep.subr.mxu0 %v261
    %382 = vmatpush1.msra.mxu0 %v260
    %383 = vmatprep.subr.mxu0 %v263
    %384 = vmatpush1.msra.mxu0 %v262
    %385 = vmatprep.subr.mxu0 %v265
    %386 = vmatpush1.msra.mxu0 %v264
    %387 = vmatprep.subr.mxu0 %v267
    %388 = vmatpush1.msra.mxu0 %v266
    %389 = vmatprep.subr.mxu0 0.0
    %390 = vmatpush1.msra.mxu0 0.0
    %391 = vmatprep.subr.mxu0 0.0
    %392 = vmatpush1.msra.mxu0 0.0
    %393 = vmatprep.subr.mxu0 0.0
    %394 = vmatpush1.msra.mxu0 0.0
    %395 = vmatprep.subr.mxu0 0.0
    %396 = vmatpush1.msra.mxu0 0.0
    %397 = vmatprep.subr.mxu0 0.0
    %398 = vmatpush1.msra.mxu0 0.0
    %399 = vmatprep.subr.mxu0 0.0
    %400 = vmatpush1.msra.mxu0 0.0
    %401 = vmatprep.subr.mxu0 0.0
    %402 = vmatpush1.msra.mxu0 0.0
    %403 = vmatprep.subr.mxu0 0.0
    %404 = vmatpush1.msra.mxu0 0.0
    %405 = vmatprep.subr.mxu0 0.0
    %406 = vmatpush1.msra.mxu0 0.0
    %407 = vmatprep.subr.mxu0 0.0
    %408 = vmatpush1.msra.mxu0 0.0
    %409 = vmatprep.subr.mxu0 0.0
    %410 = vmatpush1.msra.mxu0 0.0
    %411 = vmatprep.subr.mxu0 0.0
    %412 = vmatpush1.msra.mxu0 0.0
    %413 = vmatprep.subr.mxu0 0.0
    %414 = vmatpush1.msra.mxu0 0.0
    %415 = vmatprep.subr.mxu0 0.0
    %416 = vmatpush1.msra.mxu0 0.0
    %417 = vmatprep.subr.mxu0 0.0
    %418 = vmatpush1.msra.mxu0 0.0
    %419 = vmatprep.subr.mxu0 0.0
    %420 = vmatpush1.msra.mxu0 0.0
    %421 = vmatprep.mubr.f32.mxu0 0.0
    %422 = vmatmul.mubr.f32.gmra.mrb[0].mxu0 %v168
    %v423 = vpop.f32.mrb[0].mxu0
    %v424 = vadd.f32 %v335, %v423
    %v425 = vpop.f32.mrb[0].mxu0
    %v426 = vadd.f32 %v337, %v425
    %427 = vmatprep.mubr.f32.mxu0 0.0
    %428 = vmatmul.mubr.f32.gmra.mrb[0].mxu0 %v169
    %v429 = vpop.f32.mrb[0].mxu0
    %v430 = vadd.f32 %v341, %v429
    %v431 = vpop.f32.mrb[0].mxu0
    %v432 = vadd.f32 %v343, %v431
    %433 = vmatprep.mubr.f32.mxu0 0.0
    %434 = vmatmul.mubr.f32.gmra.mrb[0].mxu0 %v170
    %v435 = vpop.f32.mrb[0].mxu0
    %v436 = vadd.f32 %v347, %v435
    %v437 = vpop.f32.mrb[0].mxu0
    %v438 = vadd.f32 %v349, %v437
    %439 = vmatprep.mubr.f32.mxu0 0.0
    %440 = vmatmul.mubr.f32.gmra.mrb[0].mxu0 %v171
    %v441 = vpop.f32.mrb[0].mxu0
    %v442 = vadd.f32 %v353, %v441
    %v443 = vpop.f32.mrb[0].mxu0
    %v444 = vadd.f32 %v355, %v443
    %445 = vdwg.mxu0
    %v446 = vlaneseq
    %v447 = vshrl.u32 %v446, 7
    %v448 = vsub.s32 0, %v447
    %v449 = vrot.slane %v80, %v448
    %v450 = vadd.f32 %v426, %v449
    %v451 = vadd.f32 %v432, %v449
    %v452 = vadd.f32 %v438, %v449
    %v453 = vadd.f32 %v444, %v449
    %v454 = vadd.f32 %v424, %v430
    %v455 = vadd.f32 %v454, %v436
    %v456 = vadd.f32 %v455, %v442
    %v457 = vrot.slane %v456, 4
    %v458 = vadd.f32 %v456, %v457
    %v459 = vrot.slane %v458, 2
    %v460 = vadd.f32 %v458, %v459
    %v461 = vrot.slane %v460, 1
    %v462 = vadd.f32 %v460, %v461
    %v463 = vld [vmem:[#allocation8] sm:$0xff]
    %v464 = vld [vmem:[#allocation8 + $0x8] sm:$0xff]
    %v465 = vld [vmem:[#allocation8 + $0x10] sm:$0xff]
    %v466 = vld [vmem:[#allocation8 + $0x18] sm:$0xff]
    %v467 = vld [vmem:[#allocation8 + $0x20] sm:$0xff]
    %v468 = vld [vmem:[#allocation8 + $0x28] sm:$0xff]
    %v469 = vld [vmem:[#allocation8 + $0x30] sm:$0xff]
    %v470 = vld [vmem:[#allocation8 + $0x38] sm:$0xff]
    %v471 = vld [vmem:[#allocation8 + $0x40] sm:$0xff]
    %v472 = vld [vmem:[#allocation8 + $0x48] sm:$0xff]
    %v473 = vld [vmem:[#allocation8 + $0x50] sm:$0xff]
    %v474 = vld [vmem:[#allocation8 + $0x58] sm:$0xff]
    %v475 = vld [vmem:[#allocation8 + $0x60] sm:$0xff]
    %v476 = vld [vmem:[#allocation8 + $0x68] sm:$0xff]
    %v477 = vld [vmem:[#allocation8 + $0x70] sm:$0xff]
    %v478 = vld [vmem:[#allocation8 + $0x78] sm:$0xff]
    %479 = vmatprep.subr.mxu0 0.0
    %480 = vmatpush1.msra.mxu0 %v463
    %481 = vmatprep.subr.mxu0 0.0
    %482 = vmatpush1.msra.mxu0 %v464
    %483 = vmatprep.subr.mxu0 0.0
    %484 = vmatpush1.msra.mxu0 %v465
    %485 = vmatprep.subr.mxu0 0.0
    %486 = vmatpush1.msra.mxu0 %v466
    %487 = vmatprep.subr.mxu0 0.0
    %488 = vmatpush1.msra.mxu0 %v467
    %489 = vmatprep.subr.mxu0 0.0
    %490 = vmatpush1.msra.mxu0 %v468
    %491 = vmatprep.subr.mxu0 0.0
    %492 = vmatpush1.msra.mxu0 %v469
    %493 = vmatprep.subr.mxu0 0.0
    %494 = vmatpush1.msra.mxu0 %v470
    %495 = vmatprep.subr.mxu0 0.0
    %496 = vmatpush1.msra.mxu0 %v471
    %497 = vmatprep.subr.mxu0 0.0
    %498 = vmatpush1.msra.mxu0 %v472
    %499 = vmatprep.subr.mxu0 0.0
    %500 = vmatpush1.msra.mxu0 %v473
    %501 = vmatprep.subr.mxu0 0.0
    %502 = vmatpush1.msra.mxu0 %v474
    %503 = vmatprep.subr.mxu0 0.0
    %504 = vmatpush1.msra.mxu0 %v475
    %505 = vmatprep.subr.mxu0 0.0
    %506 = vmatpush1.msra.mxu0 %v476
    %507 = vmatprep.subr.mxu0 0.0
    %508 = vmatpush1.msra.mxu0 %v477
    %509 = vmatprep.subr.mxu0 0.0
    %510 = vmatpush1.msra.mxu0 %v478
    %511 = vmatprep.subr.mxu0 0.0
    %512 = vmatpush1.msra.mxu0 0.0
    %513 = vmatprep.subr.mxu0 0.0
    %514 = vmatpush1.msra.mxu0 0.0
    %515 = vmatprep.subr.mxu0 0.0
    %516 = vmatpush1.msra.mxu0 0.0
    %517 = vmatprep.subr.mxu0 0.0
    %518 = vmatpush1.msra.mxu0 0.0
    %519 = vmatprep.subr.mxu0 0.0
    %520 = vmatpush1.msra.mxu0 0.0
    %521 = vmatprep.subr.mxu0 0.0
    %522 = vmatpush1.msra.mxu0 0.0
    %523 = vmatprep.subr.mxu0 0.0
    %524 = vmatpush1.msra.mxu0 0.0
    %525 = vmatprep.subr.mxu0 0.0
    %526 = vmatpush1.msra.mxu0 0.0
    %527 = vmatprep.subr.mxu0 0.0
    %528 = vmatpush1.msra.mxu0 0.0
    %529 = vmatprep.subr.mxu0 0.0
    %530 = vmatpush1.msra.mxu0 0.0
    %531 = vmatprep.subr.mxu0 0.0
    %532 = vmatpush1.msra.mxu0 0.0
    %533 = vmatprep.subr.mxu0 0.0
    %534 = vmatpush1.msra.mxu0 0.0
    %535 = vmatprep.subr.mxu0 0.0
    %536 = vmatpush1.msra.mxu0 0.0
    %537 = vmatprep.subr.mxu0 0.0
    %538 = vmatpush1.msra.mxu0 0.0
    %539 = vmatprep.subr.mxu0 0.0
    %540 = vmatpush1.msra.mxu0 0.0
    %541 = vmatprep.subr.mxu0 0.0
    %542 = vmatpush1.msra.mxu0 0.0
    %543 = vmatprep.mubr.f32.mxu0 0.0
    %544 = vmatmul.mubr.f32.gmra.mrb[0].mxu0 %v462
    %v545 = vpop.f32.mrb[0].mxu0
    %v546 = vadd.f32 0.0, %v545
    %v547 = vpop.f32.mrb[0].mxu0
    %548 = vdwg.mxu0
    %v549 = vmul.f32 %v546, 0.001953125
    %v550 = vlaneseq
    %v551 = vshrl.u32 %v550, 7
    %v552 = vsub.s32 0, %v551
    %v553 = vrot.slane %v549, %v552
    %v554 = vsub.f32 %v424, %v553
    %v555 = vsub.f32 %v430, %v553
    %v556 = vsub.f32 %v436, %v553
    %v557 = vsub.f32 %v442, %v553
    %v558 = vmul.f32 %v554, %v554
    %v559 = vmul.f32 %v555, %v555
    %v560 = vmul.f32 %v556, %v556
    %v561 = vmul.f32 %v557, %v557
    %v562 = vadd.f32 %v558, %v559
    %v563 = vadd.f32 %v562, %v560
    %v564 = vadd.f32 %v563, %v561
    %v565 = vrot.slane %v564, 4
    %v566 = vadd.f32 %v564, %v565
    %v567 = vrot.slane %v566, 2
    %v568 = vadd.f32 %v566, %v567
    %v569 = vrot.slane %v568, 1
    %v570 = vadd.f32 %v568, %v569
    %571 = vmatprep.subr.mxu0 0.0
    %572 = vmatpush1.msra.mxu0 %v463
    %573 = vmatprep.subr.mxu0 0.0
    %574 = vmatpush1.msra.mxu0 %v464
    %575 = vmatprep.subr.mxu0 0.0
    %576 = vmatpush1.msra.mxu0 %v465
    %577 = vmatprep.subr.mxu0 0.0
    %578 = vmatpush1.msra.mxu0 %v466
    %579 = vmatprep.subr.mxu0 0.0
    %580 = vmatpush1.msra.mxu0 %v467
    %581 = vmatprep.subr.mxu0 0.0
    %582 = vmatpush1.msra.mxu0 %v468
    %583 = vmatprep.subr.mxu0 0.0
    %584 = vmatpush1.msra.mxu0 %v469
    %585 = vmatprep.subr.mxu0 0.0
    %586 = vmatpush1.msra.mxu0 %v470
    %587 = vmatprep.subr.mxu0 0.0
    %588 = vmatpush1.msra.mxu0 %v471
    %589 = vmatprep.subr.mxu0 0.0
    %590 = vmatpush1.msra.mxu0 %v472
    %591 = vmatprep.subr.mxu0 0.0
    %592 = vmatpush1.msra.mxu0 %v473
    %593 = vmatprep.subr.mxu0 0.0
    %594 = vmatpush1.msra.mxu0 %v474
    %595 = vmatprep.subr.mxu0 0.0
    %596 = vmatpush1.msra.mxu0 %v475
    %597 = vmatprep.subr.mxu0 0.0
    %598 = vmatpush1.msra.mxu0 %v476
    %599 = vmatprep.subr.mxu0 0.0
    %600 = vmatpush1.msra.mxu0 %v477
    %601 = vmatprep.subr.mxu0 0.0
    %602 = vmatpush1.msra.mxu0 %v478
    %603 = vmatprep.subr.mxu0 0.0
    %604 = vmatpush1.msra.mxu0 0.0
    %605 = vmatprep.subr.mxu0 0.0
    %606 = vmatpush1.msra.mxu0 0.0
    %607 = vmatprep.subr.mxu0 0.0
    %608 = vmatpush1.msra.mxu0 0.0
    %609 = vmatprep.subr.mxu0 0.0
    %610 = vmatpush1.msra.mxu0 0.0
    %611 = vmatprep.subr.mxu0 0.0
    %612 = vmatpush1.msra.mxu0 0.0
    %613 = vmatprep.subr.mxu0 0.0
    %614 = vmatpush1.msra.mxu0 0.0
    %615 = vmatprep.subr.mxu0 0.0
    %616 = vmatpush1.msra.mxu0 0.0
    %617 = vmatprep.subr.mxu0 0.0
    %618 = vmatpush1.msra.mxu0 0.0
    %619 = vmatprep.subr.mxu0 0.0
    %620 = vmatpush1.msra.mxu0 0.0
    %621 = vmatprep.subr.mxu0 0.0
    %622 = vmatpush1.msra.mxu0 0.0
    %623 = vmatprep.subr.mxu0 0.0
    %624 = vmatpush1.msra.mxu0 0.0
    %625 = vmatprep.subr.mxu0 0.0
    %626 = vmatpush1.msra.mxu0 0.0
    %627 = vmatprep.subr.mxu0 0.0
    %628 = vmatpush1.msra.mxu0 0.0
    %629 = vmatprep.subr.mxu0 0.0
    %630 = vmatpush1.msra.mxu0 0.0
    %631 = vmatprep.subr.mxu0 0.0
    %632 = vmatpush1.msra.mxu0 0.0
    %633 = vmatprep.subr.mxu0 0.0
    %634 = vmatpush1.msra.mxu0 0.0
    %635 = vmatprep.mubr.f32.mxu0 0.0
    %636 = vmatmul.mubr.f32.gmra.mrb[0].mxu0 %v570
    %v637 = vpop.f32.mrb[0].mxu0
    %v638 = vadd.f32 0.0, %v637
    %v639 = vpop.f32.mrb[0].mxu0
    %640 = vdwg.mxu0
    %v641 = vmul.f32 %v638, 0.001953125
    %v642 = vadd.f32 %v641, 1e-05
    %v643 = vrsqrt.pop %v642
    %v644 = vlaneseq
    %v645 = vshrl.u32 %v644, 7
    %v646 = vsub.s32 0, %v645
    %v647 = vrot.slane %v643, %v646
    %v648 = vmul.f32 %v554, %v647
    %v649 = vmul.f32 %v555, %v647
    %v650 = vmul.f32 %v556, %v647
    %v651 = vmul.f32 %v557, %v647
    %v652 = vlaneseq
    %v653 = vshrl.u32 %v652, 7
    %v654 = vsub.s32 0, %v653
    %v655 = vrot.slane %v76, %v654
    %v656 = vmul.f32 %v648, %v655
    %v657 = vmul.f32 %v649, %v655
    %v658 = vmul.f32 %v650, %v655
    %v659 = vmul.f32 %v651, %v655
    %v660 = vlaneseq
    %v661 = vshrl.u32 %v660, 7
    %v662 = vsub.s32 0, %v661
    %v663 = vrot.slane %v77, %v662
    %v664 = vadd.f32 %v656, %v663
    %v665 = vadd.f32 %v657, %v663
    %v666 = vadd.f32 %v658, %v663
    %v667 = vadd.f32 %v659, %v663
    %v668 = vmax.f32 %v664, 0.0
    %v669 = vmax.f32 %v665, 0.0
    %v670 = vmax.f32 %v666, 0.0
    %v671 = vmax.f32 %v667, 0.0
    %v672 = vrot.slane %v668, 7
    %v673 = vrot.slane %v669, 7
    %v674 = vrot.slane %v670, 7
    %v675 = vrot.slane %v671, 7
    %v676 = vsel %vm146, %v674, %v675
    %v677 = vsel %vm146, %v673, %v674
    %v678 = vsel %vm146, %v672, %v673
    %v679 = vsel %vm146, %v675, %v672
    %v680 = vsel %vm138, %v679, 0.0
    %v681 = vsel %vm139, %v678, 0.0
    %v682 = vsel %vm140, %v677, 0.0
    %v683 = vsel %vm141, %v676, 0.0
    %v684 = vrot.slane %v668, 1
    %v685 = vrot.slane %v669, 1
    %v686 = vrot.slane %v670, 1
    %v687 = vrot.slane %v671, 1
    %v688 = vsel %vm163, %v686, %v687
    %v689 = vsel %vm163, %v685, %v686
    %v690 = vsel %vm163, %v684, %v685
    %v691 = vsel %vm163, %v687, %v684
    %v692 = vsel %vm155, %v690, 0.0
    %v693 = vsel %vm156, %v689, 0.0
    %v694 = vsel %vm157, %v688, 0.0
    %v695 = vsel %vm158, %v691, 0.0
    %v696 = vld [vmem:[#allocation7] sm:$0xff]
    %v697 = vld [vmem:[#allocation7 + $0x8] sm:$0xff]
    %v698 = vld [vmem:[#allocation7 + $0x10] sm:$0xff]
    %v699 = vld [vmem:[#allocation7 + $0x18] sm:$0xff]
    %v700 = vld [vmem:[#allocation7 + $0x20] sm:$0xff]
    %v701 = vld [vmem:[#allocation7 + $0x28] sm:$0xff]
    %v702 = vld [vmem:[#allocation7 + $0x30] sm:$0xff]
    %v703 = vld [vmem:[#allocation7 + $0x38] sm:$0xff]
    %v704 = vld [vmem:[#allocation7 + $0x40] sm:$0xff]
    %v705 = vld [vmem:[#allocation7 + $0x48] sm:$0xff]
    %v706 = vld [vmem:[#allocation7 + $0x50] sm:$0xff]
    %v707 = vld [vmem:[#allocation7 + $0x58] sm:$0xff]
    %v708 = vld [vmem:[#allocation7 + $0x60] sm:$0xff]
    %v709 = vld [vmem:[#allocation7 + $0x68] sm:$0xff]
    %v710 = vld [vmem:[#allocation7 + $0x70] sm:$0xff]
    %v711 = vld [vmem:[#allocation7 + $0x78] sm:$0xff]
    %v712 = vld [vmem:[#allocation7 + $0x80] sm:$0xff]
    %v713 = vld [vmem:[#allocation7 + $0x88] sm:$0xff]
    %v714 = vld [vmem:[#allocation7 + $0x90] sm:$0xff]
    %v715 = vld [vmem:[#allocation7 + $0x98] sm:$0xff]
    %v716 = vld [vmem:[#allocation7 + $0xa0] sm:$0xff]
    %v717 = vld [vmem:[#allocation7 + $0xa8] sm:$0xff]
    %v718 = vld [vmem:[#allocation7 + $0xb0] sm:$0xff]
    %v719 = vld [vmem:[#allocation7 + $0xb8] sm:$0xff]
    %v720 = vld [vmem:[#allocation7 + $0xc0] sm:$0xff]
    %v721 = vld [vmem:[#allocation7 + $0xc8] sm:$0xff]
    %v722 = vld [vmem:[#allocation7 + $0xd0] sm:$0xff]
    %v723 = vld [vmem:[#allocation7 + $0xd8] sm:$0xff]
    %v724 = vld [vmem:[#allocation7 + $0xe0] sm:$0xff]
    %v725 = vld [vmem:[#allocation7 + $0xe8] sm:$0xff]
    %v726 = vld [vmem:[#allocation7 + $0xf0] sm:$0xff]
    %v727 = vld [vmem:[#allocation7 + $0xf8] sm:$0xff]
    %v728 = vld [vmem:[#allocation7 + $0x100] sm:$0xff]
    %v729 = vld [vmem:[#allocation7 + $0x108] sm:$0xff]
    %v730 = vld [vmem:[#allocation7 + $0x110] sm:$0xff]
    %v731 = vld [vmem:[#allocation7 + $0x118] sm:$0xff]
    %v732 = vld [vmem:[#allocation7 + $0x120] sm:$0xff]
    %v733 = vld [vmem:[#allocation7 + $0x128] sm:$0xff]
    %v734 = vld [vmem:[#allocation7 + $0x130] sm:$0xff]
    %v735 = vld [vmem:[#allocation7 + $0x138] sm:$0xff]
    %v736 = vld [vmem:[#allocation7 + $0x140] sm:$0xff]
    %v737 = vld [vmem:[#allocation7 + $0x148] sm:$0xff]
    %v738 = vld [vmem:[#allocation7 + $0x150] sm:$0xff]
    %v739 = vld [vmem:[#allocation7 + $0x158] sm:$0xff]
    %v740 = vld [vmem:[#allocation7 + $0x160] sm:$0xff]
    %v741 = vld [vmem:[#allocation7 + $0x168] sm:$0xff]
    %v742 = vld [vmem:[#allocation7 + $0x170] sm:$0xff]
    %v743 = vld [vmem:[#allocation7 + $0x178] sm:$0xff]
    %744 = vmatprep.subr.mxu0 0.0
    %745 = vmatpush1.msra.mxu0 %v696
    %746 = vmatprep.subr.mxu0 0.0
    %747 = vmatpush1.msra.mxu0 %v697
    %748 = vmatprep.subr.mxu0 0.0
    %749 = vmatpush1.msra.mxu0 %v698
    %750 = vmatprep.subr.mxu0 0.0
    %751 = vmatpush1.msra.mxu0 %v699
    %752 = vmatprep.subr.mxu0 0.0
    %753 = vmatpush1.msra.mxu0 %v700
    %754 = vmatprep.subr.mxu0 0.0
    %755 = vmatpush1.msra.mxu0 %v701
    %756 = vmatprep.subr.mxu0 0.0
    %757 = vmatpush1.msra.mxu0 %v702
    %758 = vmatprep.subr.mxu0 0.0
    %759 = vmatpush1.msra.mxu0 %v703
    %760 = vmatprep.subr.mxu0 0.0
    %761 = vmatpush1.msra.mxu0 %v704
    %762 = vmatprep.subr.mxu0 0.0
    %763 = vmatpush1.msra.mxu0 %v705
    %764 = vmatprep.subr.mxu0 0.0
    %765 = vmatpush1.msra.mxu0 %v706
    %766 = vmatprep.subr.mxu0 0.0
    %767 = vmatpush1.msra.mxu0 %v707
    %768 = vmatprep.subr.mxu0 0.0
    %769 = vmatpush1.msra.mxu0 %v708
    %770 = vmatprep.subr.mxu0 0.0
    %771 = vmatpush1.msra.mxu0 %v709
    %772 = vmatprep.subr.mxu0 0.0
    %773 = vmatpush1.msra.mxu0 %v710
    %774 = vmatprep.subr.mxu0 0.0
    %775 = vmatpush1.msra.mxu0 %v711
    %776 = vmatprep.subr.mxu0 0.0
    %777 = vmatpush1.msra.mxu0 %v712
    %778 = vmatprep.subr.mxu0 0.0
    %779 = vmatpush1.msra.mxu0 %v713
    %780 = vmatprep.subr.mxu0 0.0
    %781 = vmatpush1.msra.mxu0 %v714
    %782 = vmatprep.subr.mxu0 0.0
    %783 = vmatpush1.msra.mxu0 %v715
    %784 = vmatprep.subr.mxu0 0.0
    %785 = vmatpush1.msra.mxu0 %v716
    %786 = vmatprep.subr.mxu0 0.0
    %787 = vmatpush1.msra.mxu0 %v717
    %788 = vmatprep.subr.mxu0 0.0
    %789 = vmatpush1.msra.mxu0 %v718
    %790 = vmatprep.subr.mxu0 0.0
    %791 = vmatpush1.msra.mxu0 %v719
    %792 = vmatprep.subr.mxu0 0.0
    %793 = vmatpush1.msra.mxu0 %v720
    %794 = vmatprep.subr.mxu0 0.0
    %795 = vmatpush1.msra.mxu0 %v721
    %796 = vmatprep.subr.mxu0 0.0
    %797 = vmatpush1.msra.mxu0 %v722
    %798 = vmatprep.subr.mxu0 0.0
    %799 = vmatpush1.msra.mxu0 %v723
    %800 = vmatprep.subr.mxu0 0.0
    %801 = vmatpush1.msra.mxu0 %v724
    %802 = vmatprep.subr.mxu0 0.0
    %803 = vmatpush1.msra.mxu0 %v725
    %804 = vmatprep.subr.mxu0 0.0
    %805 = vmatpush1.msra.mxu0 %v726
    %806 = vmatprep.subr.mxu0 0.0
    %807 = vmatpush1.msra.mxu0 %v727
    %808 = vmatprep.mubr.f32.mxu0 %v668
    %809 = vmatmul.mubr.f32.gmra.mrb[0].mxu0 %v680
    %v810 = vpop.f32.mrb[0].mxu0
    %v811 = vadd.f32 0.0, %v810
    %v812 = vpop.f32.mrb[0].mxu0
    %813 = vmatprep.mubr.f32.mxu0 %v669
    %814 = vmatmul.mubr.f32.gmra.mrb[0].mxu0 %v681
    %v815 = vpop.f32.mrb[0].mxu0
    %v816 = vadd.f32 0.0, %v815
    %v817 = vpop.f32.mrb[0].mxu0
    %818 = vmatprep.mubr.f32.mxu0 %v670
    %819 = vmatmul.mubr.f32.gmra.mrb[0].mxu0 %v682
    %v820 = vpop.f32.mrb[0].mxu0
    %v821 = vadd.f32 0.0, %v820
    %v822 = vpop.f32.mrb[0].mxu0
    %823 = vmatprep.mubr.f32.mxu0 %v671
    %824 = vmatmul.mubr.f32.gmra.mrb[0].mxu0 %v683
    %v825 = vpop.f32.mrb[0].mxu0
    %v826 = vadd.f32 0.0, %v825
    %v827 = vpop.f32.mrb[0].mxu0
    %828 = vdwg.mxu0
    %829 = vmatprep.subr.mxu0 0.0
    %830 = vmatpush1.msra.mxu0 %v728
    %831 = vmatprep.subr.mxu0 0.0
    %832 = vmatpush1.msra.mxu0 %v729
    %833 = vmatprep.subr.mxu0 0.0
    %834 = vmatpush1.msra.mxu0 %v730
    %835 = vmatprep.subr.mxu0 0.0
    %836 = vmatpush1.msra.mxu0 %v731
    %837 = vmatprep.subr.mxu0 0.0
    %838 = vmatpush1.msra.mxu0 %v732
    %839 = vmatprep.subr.mxu0 0.0
    %840 = vmatpush1.msra.mxu0 %v733
    %841 = vmatprep.subr.mxu0 0.0
    %842 = vmatpush1.msra.mxu0 %v734
    %843 = vmatprep.subr.mxu0 0.0
    %844 = vmatpush1.msra.mxu0 %v735
    %845 = vmatprep.subr.mxu0 0.0
    %846 = vmatpush1.msra.mxu0 %v736
    %847 = vmatprep.subr.mxu0 0.0
    %848 = vmatpush1.msra.mxu0 %v737
    %849 = vmatprep.subr.mxu0 0.0
    %850 = vmatpush1.msra.mxu0 %v738
    %851 = vmatprep.subr.mxu0 0.0
    %852 = vmatpush1.msra.mxu0 %v739
    %853 = vmatprep.subr.mxu0 0.0
    %854 = vmatpush1.msra.mxu0 %v740
    %855 = vmatprep.subr.mxu0 0.0
    %856 = vmatpush1.msra.mxu0 %v741
    %857 = vmatprep.subr.mxu0 0.0
    %858 = vmatpush1.msra.mxu0 %v742
    %859 = vmatprep.subr.mxu0 0.0
    %860 = vmatpush1.msra.mxu0 %v743
    %861 = vmatprep.subr.mxu0 0.0
    %862 = vmatpush1.msra.mxu0 0.0
    %863 = vmatprep.subr.mxu0 0.0
    %864 = vmatpush1.msra.mxu0 0.0
    %865 = vmatprep.subr.mxu0 0.0
    %866 = vmatpush1.msra.mxu0 0.0
    %867 = vmatprep.subr.mxu0 0.0
    %868 = vmatpush1.msra.mxu0 0.0
    %869 = vmatprep.subr.mxu0 0.0
    %870 = vmatpush1.msra.mxu0 0.0
    %871 = vmatprep.subr.mxu0 0.0
    %872 = vmatpush1.msra.mxu0 0.0
    %873 = vmatprep.subr.mxu0 0.0
    %874 = vmatpush1.msra.mxu0 0.0
    %875 = vmatprep.subr.mxu0 0.0
    %876 = vmatpush1.msra.mxu0 0.0
    %877 = vmatprep.subr.mxu0 0.0
    %878 = vmatpush1.msra.mxu0 0.0
    %879 = vmatprep.subr.mxu0 0.0
    %880 = vmatpush1.msra.mxu0 0.0
    %881 = vmatprep.subr.mxu0 0.0
    %882 = vmatpush1.msra.mxu0 0.0
    %883 = vmatprep.subr.mxu0 0.0
    %884 = vmatpush1.msra.mxu0 0.0
    %885 = vmatprep.subr.mxu0 0.0
    %886 = vmatpush1.msra.mxu0 0.0
    %887 = vmatprep.subr.mxu0 0.0
    %888 = vmatpush1.msra.mxu0 0.0
    %889 = vmatprep.subr.mxu0 0.0
    %890 = vmatpush1.msra.mxu0 0.0
    %891 = vmatprep.subr.mxu0 0.0
    %892 = vmatpush1.msra.mxu0 0.0
    %893 = vmatprep.mubr.f32.mxu0 0.0
    %894 = vmatmul.mubr.f32.gmra.mrb[0].mxu0 %v692
    %v895 = vpop.f32.mrb[0].mxu0
    %v896 = vadd.f32 %v811, %v895
    %v897 = vpop.f32.mrb[0].mxu0
    %898 = vmatprep.mubr.f32.mxu0 0.0
    %899 = vmatmul.mubr.f32.gmra.mrb[0].mxu0 %v693
    %v900 = vpop.f32.mrb[0].mxu0
    %v901 = vadd.f32 %v816, %v900
    %v902 = vpop.f32.mrb[0].mxu0
    %903 = vmatprep.mubr.f32.mxu0 0.0
    %904 = vmatmul.mubr.f32.gmra.mrb[0].mxu0 %v694
    %v905 = vpop.f32.mrb[0].mxu0
    %v906 = vadd.f32 %v821, %v905
    %v907 = vpop.f32.mrb[0].mxu0
    %908 = vmatprep.mubr.f32.mxu0 0.0
    %909 = vmatmul.mubr.f32.gmra.mrb[0].mxu0 %v695
    %v910 = vpop.f32.mrb[0].mxu0
    %v911 = vadd.f32 %v826, %v910
    %v912 = vpop.f32.mrb[0].mxu0
    %913 = vdwg.mxu0
    %v914 = vadd.f32 %v896, %v901
    %v915 = vadd.f32 %v914, %v906
    %v916 = vadd.f32 %v915, %v911
    %v917 = vrot.slane %v916, 4
    %v918 = vadd.f32 %v916, %v917
    %v919 = vrot.slane %v918, 2
    %v920 = vadd.f32 %v918, %v919
    %v921 = vrot.slane %v920, 1
    %v922 = vadd.f32 %v920, %v921
    %923 = vmatprep.subr.mxu0 0.0
    %924 = vmatpush1.msra.mxu0 %v463
    %925 = vmatprep.subr.mxu0 0.0
    %926 = vmatpush1.msra.mxu0 %v464
    %927 = vmatprep.subr.mxu0 0.0
    %928 = vmatpush1.msra.mxu0 %v465
    %929 = vmatprep.subr.mxu0 0.0
    %930 = vmatpush1.msra.mxu0 %v466
    %931 = vmatprep.subr.mxu0 0.0
    %932 = vmatpush1.msra.mxu0 %v467
    %933 = vmatprep.subr.mxu0 0.0
    %934 = vmatpush1.msra.mxu0 %v468
    %935 = vmatprep.subr.mxu0 0.0
    %936 = vmatpush1.msra.mxu0 %v469
    %937 = vmatprep.subr.mxu0 0.0
    %938 = vmatpush1.msra.mxu0 %v470
    %939 = vmatprep.subr.mxu0 0.0
    %940 = vmatpush1.msra.mxu0 %v471
    %941 = vmatprep.subr.mxu0 0.0
    %942 = vmatpush1.msra.mxu0 %v472
    %943 = vmatprep.subr.mxu0 0.0
    %944 = vmatpush1.msra.mxu0 %v473
    %945 = vmatprep.subr.mxu0 0.0
    %946 = vmatpush1.msra.mxu0 %v474
    %947 = vmatprep.subr.mxu0 0.0
    %948 = vmatpush1.msra.mxu0 %v475
    %949 = vmatprep.subr.mxu0 0.0
    %950 = vmatpush1.msra.mxu0 %v476
    %951 = vmatprep.subr.mxu0 0.0
    %952 = vmatpush1.msra.mxu0 %v477
    %953 = vmatprep.subr.mxu0 0.0
    %954 = vmatpush1.msra.mxu0 %v478
    %955 = vmatprep.subr.mxu0 0.0
    %956 = vmatpush1.msra.mxu0 0.0
    %957 = vmatprep.subr.mxu0 0.0
    %958 = vmatpush1.msra.mxu0 0.0
    %959 = vmatprep.subr.mxu0 0.0
    %960 = vmatpush1.msra.mxu0 0.0
    %961 = vmatprep.subr.mxu0 0.0
    %962 = vmatpush1.msra.mxu0 0.0
    %963 = vmatprep.subr.mxu0 0.0
    %964 = vmatpush1.msra.mxu0 0.0
    %965 = vmatprep.subr.mxu0 0.0
    %966 = vmatpush1.msra.mxu0 0.0
    %967 = vmatprep.subr.mxu0 0.0
    %968 = vmatpush1.msra.mxu0 0.0
    %969 = vmatprep.subr.mxu0 0.0
    %970 = vmatpush1.msra.mxu0 0.0
    %971 = vmatprep.subr.mxu0 0.0
    %972 = vmatpush1.msra.mxu0 0.0
    %973 = vmatprep.subr.mxu0 0.0
    %974 = vmatpush1.msra.mxu0 0.0
    %975 = vmatprep.subr.mxu0 0.0
    %976 = vmatpush1.msra.mxu0 0.0
    %977 = vmatprep.subr.mxu0 0.0
    %978 = vmatpush1.msra.mxu0 0.0
    %979 = vmatprep.subr.mxu0 0.0
    %980 = vmatpush1.msra.mxu0 0.0
    %981 = vmatprep.subr.mxu0 0.0
    %982 = vmatpush1.msra.mxu0 0.0
    %983 = vmatprep.subr.mxu0 0.0
    %984 = vmatpush1.msra.mxu0 0.0
    %985 = vmatprep.subr.mxu0 0.0
    %986 = vmatpush1.msra.mxu0 0.0
    %987 = vmatprep.mubr.f32.mxu0 0.0
    %988 = vmatmul.mubr.f32.gmra.mrb[0].mxu0 %v922
    %v989 = vpop.f32.mrb[0].mxu0
    %v990 = vadd.f32 0.0, %v989
    %v991 = vpop.f32.mrb[0].mxu0
    %992 = vdwg.mxu0
    %v993 = vmul.f32 %v990, 0.001953125
    %v994 = vlaneseq
    %v995 = vshrl.u32 %v994, 7
    %v996 = vsub.s32 0, %v995
    %v997 = vrot.slane %v993, %v996
    %v998 = vsub.f32 %v896, %v997
    %v999 = vsub.f32 %v901, %v997
    %v1000 = vsub.f32 %v906, %v997
    %v1001 = vsub.f32 %v911, %v997
    %v1002 = vmul.f32 %v998, %v998
    %v1003 = vmul.f32 %v999, %v999
    %v1004 = vmul.f32 %v1000, %v1000
    %v1005 = vmul.f32 %v1001, %v1001
    %v1006 = vadd.f32 %v1002, %v1003
    %v1007 = vadd.f32 %v1006, %v1004
    %v1008 = vadd.f32 %v1007, %v1005
    %v1009 = vrot.slane %v1008, 4
    %v1010 = vadd.f32 %v1008, %v1009
    %v1011 = vrot.slane %v1010, 2
    %v1012 = vadd.f32 %v1010, %v1011
    %v1013 = vrot.slane %v1012, 1
    %v1014 = vadd.f32 %v1012, %v1013
    %1015 = vmatprep.subr.mxu0 0.0
    %1016 = vmatpush1.msra.mxu0 %v463
    %1017 = vmatprep.subr.mxu0 0.0
    %1018 = vmatpush1.msra.mxu0 %v464
    %1019 = vmatprep.subr.mxu0 0.0
    %1020 = vmatpush1.msra.mxu0 %v465
    %1021 = vmatprep.subr.mxu0 0.0
    %1022 = vmatpush1.msra.mxu0 %v466
    %1023 = vmatprep.subr.mxu0 0.0
    %1024 = vmatpush1.msra.mxu0 %v467
    %1025 = vmatprep.subr.mxu0 0.0
    %1026 = vmatpush1.msra.mxu0 %v468
    %1027 = vmatprep.subr.mxu0 0.0
    %1028 = vmatpush1.msra.mxu0 %v469
    %1029 = vmatprep.subr.mxu0 0.0
    %1030 = vmatpush1.msra.mxu0 %v470
    %1031 = vmatprep.subr.mxu0 0.0
    %1032 = vmatpush1.msra.mxu0 %v471
    %1033 = vmatprep.subr.mxu0 0.0
    %1034 = vmatpush1.msra.mxu0 %v472
    %1035 = vmatprep.subr.mxu0 0.0
    %1036 = vmatpush1.msra.mxu0 %v473
    %1037 = vmatprep.subr.mxu0 0.0
    %1038 = vmatpush1.msra.mxu0 %v474
    %1039 = vmatprep.subr.mxu0 0.0
    %1040 = vmatpush1.msra.mxu0 %v475
    %1041 = vmatprep.subr.mxu0 0.0
    %1042 = vmatpush1.msra.mxu0 %v476
    %1043 = vmatprep.subr.mxu0 0.0
    %1044 = vmatpush1.msra.mxu0 %v477
    %1045 = vmatprep.subr.mxu0 0.0
    %1046 = vmatpush1.msra.mxu0 %v478
    %1047 = vmatprep.subr.mxu0 0.0
    %1048 = vmatpush1.msra.mxu0 0.0
    %1049 = vmatprep.subr.mxu0 0.0
    %1050 = vmatpush1.msra.mxu0 0.0
    %1051 = vmatprep.subr.mxu0 0.0
    %1052 = vmatpush1.msra.mxu0 0.0
    %1053 = vmatprep.subr.mxu0 0.0
    %1054 = vmatpush1.msra.mxu0 0.0
    %1055 = vmatprep.subr.mxu0 0.0
    %1056 = vmatpush1.msra.mxu0 0.0
    %1057 = vmatprep.subr.mxu0 0.0
    %1058 = vmatpush1.msra.mxu0 0.0
    %1059 = vmatprep.subr.mxu0 0.0
    %1060 = vmatpush1.msra.mxu0 0.0
    %1061 = vmatprep.subr.mxu0 0.0
    %1062 = vmatpush1.msra.mxu0 0.0
    %1063 = vmatprep.subr.mxu0 0.0
    %1064 = vmatpush1.msra.mxu0 0.0
    %1065 = vmatprep.subr.mxu0 0.0
    %1066 = vmatpush1.msra.mxu0 0.0
    %1067 = vmatprep.subr.mxu0 0.0
    %1068 = vmatpush1.msra.mxu0 0.0
    %1069 = vmatprep.subr.mxu0 0.0
    %1070 = vmatpush1.msra.mxu0 0.0
    %1071 = vmatprep.subr.mxu0 0.0
    %1072 = vmatpush1.msra.mxu0 0.0
    %1073 = vmatprep.subr.mxu0 0.0
    %1074 = vmatpush1.msra.mxu0 0.0
    %1075 = vmatprep.subr.mxu0 0.0
    %1076 = vmatpush1.msra.mxu0 0.0
    %1077 = vmatprep.subr.mxu0 0.0
    %1078 = vmatpush1.msra.mxu0 0.0
    %1079 = vmatprep.mubr.f32.mxu0 0.0
    %1080 = vmatmul.mubr.f32.gmra.mrb[0].mxu0 %v1014
    %v1081 = vpop.f32.mrb[0].mxu0
    %v1082 = vadd.f32 0.0, %v1081
    %v1083 = vpop.f32.mrb[0].mxu0
    %1084 = vdwg.mxu0
    %v1085 = vmul.f32 %v1082, 0.001953125
    %v1086 = vadd.f32 %v1085, 1e-05
    %v1087 = vrsqrt.pop %v1086
    %v1088 = vlaneseq
    %v1089 = vshrl.u32 %v1088, 7
    %v1090 = vsub.s32 0, %v1089
    %v1091 = vrot.slane %v1087, %v1090
    %v1092 = vmul.f32 %v998, %v1091
    %v1093 = vmul.f32 %v999, %v1091
    %v1094 = vmul.f32 %v1000, %v1091
    %v1095 = vmul.f32 %v1001, %v1091
    %v1096 = vlaneseq
    %v1097 = vshrl.u32 %v1096, 7
    %v1098 = vsub.s32 0, %v1097
    %v1099 = vrot.slane %v78, %v1098
    %v1100 = vmul.f32 %v1092, %v1099
    %v1101 = vmul.f32 %v1093, %v1099
    %v1102 = vmul.f32 %v1094, %v1099
    %v1103 = vmul.f32 %v1095, %v1099
    %v1104 = vlaneseq
    %v1105 = vshrl.u32 %v1104, 7
    %v1106 = vsub.s32 0, %v1105
    %v1107 = vrot.slane %v79, %v1106
    %v1108 = vadd.f32 %v1100, %v1107
    %v1109 = vadd.f32 %v1101, %v1107
    %v1110 = vadd.f32 %v1102, %v1107
    %v1111 = vadd.f32 %v1103, %v1107
    %v1112 = vadd.f32 %v1108, %v450
    %v1113 = vadd.f32 %v1109, %v451
    %v1114 = vadd.f32 %v1110, %v452
    %v1115 = vadd.f32 %v1111, %v453
    %v1116 = vmax.f32 %v1112, 0.0
    %v1117 = vmax.f32 %v1113, 0.0
    %v1118 = vmax.f32 %v1114, 0.0
    %v1119 = vmax.f32 %v1115, 0.0
    %1120 = vst [vmem:[#allocation10] sm:$0xff] %v1116
    %1121 = vst [vmem:[#allocation10 + $0x8] sm:$0xff] %v1117
    %1122 = vst [vmem:[#allocation10 + $0x10] sm:$0xff] %v1118
    %1123 = vst [vmem:[#allocation10 + $0x18] sm:$0xff] %v1119
    // Predicated region
    $region38: #{tpu_custom_call.1} parent=1 // pred_check
      _
    $region39: #{tpu_custom_call.1} parent=1 // pred_check_branch
      %1125 = sbr.rel (0) target = $region41
    $region40: #{tpu_custom_call.1} parent=1 // pred_region
      %s1127 = ssub.s32 512, 512
      %1128 = vsyncadd [#allocation4], %s1127
      %s1129 = sshll.u32 [#allocation10], 4
      %s1130 = int_to_ptr.vmem [resolvable:$true] %s1129
      %1135 = dma.vmem_to_hbm [thread:$0]  %s1130, 512, %s5, [#allocation4], 128, 128, 8
    $region41: #{tpu_custom_call.1} parent=1 // pred_fallthru
      _
    // Predicated region
    $region42: #{tpu_custom_call.1} parent=1 // pred_check
      _
    $region43: #{tpu_custom_call.1} parent=1 // pred_check_branch
      %1137 = sbr.rel (0) target = $region45
    $region44: #{tpu_custom_call.1} parent=1 // pred_region
      %1138 = dma.done [#allocation4], 512
    $region45: #{tpu_custom_call.1} parent=1 // pred_fallthru
      _
    %1139 = vsyncpa [#allocation3], 1
    %1140 = vsyncpa [#allocation6], 1
    %1141 = vsyncpa [#allocation9], 1
    %1142 = vsyncpa [#allocation4], 1

</llo_original>
